<compile_context>
chip_gen: v5e
topology: v5e:2x2
jax: 0.10.0
libtpu: 0.0.40
codegen_flags: <defaults>
</compile_context>

<pallas_src>
import math
import jax
import jax.numpy as jnp
import numpy as np
from jax.experimental import pallas as pl
from jax.experimental.pallas import tpu as pltpu


def _round_up(x, m):
    return (x + m - 1) // m * m


def _pick_inner_tile(i_pad, max_tile=512):
    """Largest multiple of 128 that divides i_pad and is <= max_tile."""
    n128 = i_pad // 128
    best = 1
    for cand in range(1, max_tile // 128 + 1):
        if n128 % cand == 0:
            best = cand
    return best * 128


def prepare_swiglu_params(gamma, w_in, w_out, *, max_inner_tile=512):
    """One-time parameter prep (out of the hot path): gamma fold, pad, bf16 cast, fusion."""
    D = gamma.shape[0]
    dim_inner = w_out.shape[0]
    assert w_in.shape == (D, 2 * dim_inner)
    assert w_out.shape == (dim_inner, D)

    D_pad = _round_up(D, 128)
    I_pad = _round_up(dim_inner, 128)
    ik = _pick_inner_tile(I_pad, max_inner_tile)
    n_blocks = I_pad // ik

    f32 = jnp.float32
    # Fold the RMSNorm gamma into the proj_in rows in f32, zero-pad, then cast to bf16 once.
    w_val = jnp.zeros((D_pad, I_pad), f32).at[:D, :dim_inner].set(
        gamma.astype(f32)[:, None] * w_in[:, :dim_inner].astype(f32))
    w_gate = jnp.zeros((D_pad, I_pad), f32).at[:D, :dim_inner].set(
        gamma.astype(f32)[:, None] * w_in[:, dim_inner:].astype(f32))
    # Block-interleave [val_j | gate_j] per inner tile so a single fused RHS stream feeds the
    # MXU and the val/gate split inside the kernel is a 128-aligned (free) static slice.
    w_in_fused = jnp.concatenate(
        [w_val.reshape(D_pad, n_blocks, ik), w_gate.reshape(D_pad, n_blocks, ik)],
        axis=-1).reshape(D_pad, 2 * I_pad).astype(jnp.bfloat16)

    w_out_p = jnp.zeros((I_pad, D_pad), jnp.bfloat16).at[:dim_inner, :D].set(
        w_out.astype(jnp.bfloat16))

    return dict(w_in_fused=w_in_fused, w_out=w_out_p,
                dim=D, dim_inner=dim_inner, D_pad=D_pad, I_pad=I_pad, ik=ik)


def _make_swiglu_kernel(dim_true, ik):
    inv_dim = 1.0 / float(dim_true)
    inv_sqrt2 = 1.0 / math.sqrt(2.0)
    eps = float(jnp.finfo(jnp.float32).eps)

    def kernel(x_ref, w_in_ref, w_out_ref, o_ref, xn_ref, acc_ref):
        # x_ref:      (bm, D_pad)      row tile of the flattened input (resident across j)
        # w_in_ref:   (D_pad, 2*ik)    fused [val | gate] gamma-folded proj_in tile (bf16)
        # w_out_ref:  (ik, D_pad)      proj_out weight tile (bf16)
        # xn_ref:     (bm, D_pad) bf16 normalized-x scratch (computed once per row tile)
        # acc_ref:    (bm, D_pad) f32  proj_out accumulator
        j = pl.program_id(1)

        @pl.when(j == 0)
        def _():
            # RMSNorm statistics in f32. Padded lanes are zero so sum(x*x) is exact over the
            # true features; divide by the true dim. eps matches torch.nn.RMSNorm(eps=None).
            x = x_ref[...].astype(jnp.float32)
            mean_sq = jnp.sum(x * x, axis=-1, keepdims=True) * inv_dim
            xn_ref[...] = (x * jax.lax.rsqrt(mean_sq + eps)).astype(jnp.bfloat16)
            acc_ref[...] = jnp.zeros_like(acc_ref)

        x_n = xn_ref[...]

        # Single fused proj_in matmul for this inner tile: bf16 on the MXU, f32 accumulation.
        h = jnp.dot(x_n, w_in_ref[...], preferred_element_type=jnp.float32)   # (bm, 2*ik)
        val, gate = h[:, :ik], h[:, ik:]                                       # 128-aligned slices

        # Exact erf-based GELU (torch F.gelu default) on the gate, then SwiGLU.
        gelu_gate = 0.5 * gate * (1.0 + jax.lax.erf(gate * inv_sqrt2))
        hidden = (val * gelu_gate).astype(jnp.bfloat16)

        # proj_out partial product, accumulated across inner tiles.
        acc_ref[...] += jnp.dot(hidden, w_out_ref[...], preferred_element_type=jnp.float32)

        @pl.when(j == pl.num_programs(1) - 1)
        def _():
            o_ref[...] = acc_ref[...].astype(o_ref.dtype)

    return kernel


def swiglu_feedforward(x, params, *, block_rows=256):
    """x: (batch, seq_len, dim). params: output of prepare_swiglu_params."""
    B, T, D = x.shape
    assert D == params["dim"]
    D_pad, I_pad, ik = params["D_pad"], params["I_pad"], params["ik"]
    w_in_fused, w_out_p = params["w_in_fused"], params["w_out"]

    M = B * T
    bm = min(block_rows, _round_up(M, 128))       # >=128 rows per tile (MXU height)
    M_pad = _round_up(M, bm)
    n_row_tiles = M_pad // bm
    n_inner_tiles = I_pad // ik

    # Skip the activation pad copy when already tile-aligned.
    x2d = x.reshape(M, D)
    needs_pad = (M_pad != M) or (D_pad != D)
    if needs_pad:
        x2d = jnp.zeros((M_pad, D_pad), x.dtype).at[:M, :D].set(x2d)

    itemsize = int(jnp.dtype(x.dtype).itemsize)
    flops = 6 * M_pad * D_pad * I_pad             # fused proj_in + proj_out matmuls
    transcendentals = M_pad * I_pad + M_pad       # erf per hidden element + rsqrt per row
    bytes_accessed = (2 * M_pad * D_pad * itemsize
                      + n_row_tiles * 3 * D_pad * I_pad * 2)   # weights streamed per row tile
    cost = pl.CostEstimate(flops=int(flops), transcendentals=int(transcendentals),
                           bytes_accessed=int(bytes_accessed))

    # Per-step VMEM: double-buffered x/out row tiles + streamed weight tiles + scratch slabs
    # + f32 intermediates. Cap well below v7x's 64 MiB physical VMEM.
    need = (2 * bm * D_pad * itemsize            # x row tile (double buffered)
            + 2 * bm * D_pad * itemsize          # output row tile
            + 2 * D_pad * 2 * ik * 2             # fused proj_in tile, bf16, double buffered
            + 2 * ik * D_pad * 2                 # proj_out tile, bf16, double buffered
            + bm * D_pad * (2 + 4)               # xnorm (bf16) + accumulator (f32) scratch
            + 6 * bm * ik * 4)                   # val/gate/gelu/hidden intermediates headroom
    vmem_limit = int(min(max(2 * need, 16 << 20), 48 << 20))

    kernel = _make_swiglu_kernel(D, ik)

    out2d = pl.pallas_call(
        kernel,
        out_shape=jax.ShapeDtypeStruct((M_pad, D_pad), x.dtype),
        grid_spec=pltpu.PrefetchScalarGridSpec(
            num_scalar_prefetch=0,
            grid=(n_row_tiles, n_inner_tiles),
            in_specs=[
                pl.BlockSpec((bm, D_pad), lambda i, j: (i, 0)),        # x row tile
                pl.BlockSpec((D_pad, 2 * ik), lambda i, j: (0, j)),    # fused [val|gate] tile
                pl.BlockSpec((ik, D_pad), lambda i, j: (j, 0)),        # proj_out tile
            ],
            out_specs=pl.BlockSpec((bm, D_pad), lambda i, j: (i, 0)),
            scratch_shapes=[
                pltpu.VMEM((bm, D_pad), jnp.bfloat16),   # normalized x, computed once per row tile
                pltpu.VMEM((bm, D_pad), jnp.float32),    # proj_out accumulator
            ],
        ),
        compiler_params=pltpu.CompilerParams(
            dimension_semantics=("parallel", "arbitrary"),
            vmem_limit_bytes=vmem_limit,
        ),
        cost_estimate=cost,
    )(x2d, w_in_fused, w_out_p)

    if needs_pad:
        out2d = out2d[:M, :D]
    return out2d.reshape(B, T, D)


def _reference(x, gamma, w_in, w_out):
    """Pure-JAX f32 reference mirroring the PyTorch SwiGLUFeedForward forward."""
    x = x.astype(jnp.float32)
    eps = jnp.finfo(jnp.float32).eps
    xn = x * jax.lax.rsqrt(jnp.mean(x * x, axis=-1, keepdims=True) + eps) * gamma
    h = xn @ w_in
    dim_inner = w_out.shape[0]
    val, gate = h[..., :dim_inner], h[..., dim_inner:]
    hidden = val * jax.nn.gelu(gate, approximate=False)
    return hidden @ w_out


if __name__ == "__main__":
    # Small shapes consistent with the module: (batch, seq_len, dim)
    batch, seq_len, dim = 2, 8, 32
    expand_factor = 4.0
    dim_inner = int(dim * expand_factor * 2 / 3)  # 85, same formula as the module

    key = jax.random.PRNGKey(0)
    kx, kin, kout, kg = jax.random.split(key, 4)

    x = jax.random.normal(kx, (batch, seq_len, dim), dtype=jnp.float32)

    # nn.RMSNorm inits gamma to ones; perturb slightly here to exercise the gamma-fold path.
    gamma = 1.0 + 0.1 * jax.random.normal(kg, (dim,), dtype=jnp.float32)
    w_in = jax.random.normal(kin, (dim, 2 * dim_inner), dtype=jnp.float32) / math.sqrt(dim)
    w_out = jax.random.normal(kout, (dim_inner, dim), dtype=jnp.float32) / math.sqrt(dim_inner)

    # One-time parameter prep (out of the per-call hot path), then the kernel call.
    params = prepare_swiglu_params(gamma, w_in, w_out)
    out = swiglu_feedforward(x, params)
    out = jax.block_until_ready(out)

    ref = _reference(x, gamma, w_in, w_out)
    # bf16 matmul inputs with f32 accumulation -> loosened tolerance vs. the f32 reference.
    np.testing.assert_allclose(np.asarray(out), np.asarray(ref), rtol=2e-2, atol=2e-2)

    print("KERNEL_OK")
</pallas_src>

<mosaic_0001>
module attributes {stable_mosaic.version = 11 : i64} {
  func.func @kernel(%arg0: i32, %arg1: i32, %arg2: memref<128x128xf32, #tpu.memory_space<vmem>>, %arg3: memref<128x256xbf16, #tpu.memory_space<vmem>>, %arg4: memref<128x128xbf16, #tpu.memory_space<vmem>>, %arg5: memref<128x128xf32, #tpu.memory_space<vmem>>, %arg6: memref<128x128xbf16, #tpu.memory_space<vmem>>, %arg7: memref<128x128xf32, #tpu.memory_space<vmem>>) attributes {dimension_semantics = [#tpu.dimension_semantics<parallel>, #tpu.dimension_semantics<arbitrary>], iteration_bounds = array<i64: 1, 1>, scalar_prefetch = 0 : i64, scratch_operands = 2 : i64, tpu.core_type = #tpu.core_type<tc>, window_params = [{transform_indices = @transform_0, window_bounds = array<i64: 128, 128>}, {transform_indices = @transform_1, window_bounds = array<i64: 128, 256>}, {transform_indices = @transform_2, window_bounds = array<i64: 128, 128>}, {transform_indices = @transform_3, window_bounds = array<i64: 128, 128>}]} {
    %c0_i32 = arith.constant 0 : i32
    %0 = arith.cmpi eq, %arg1, %c0_i32 : i32
    %1 = arith.extui %0 : i1 to i32
    %c0_i32_0 = arith.constant 0 : i32
    %2 = arith.cmpi ne, %1, %c0_i32_0 : i32
    scf.if %2 {
      %c0_16 = arith.constant 0 : index
      %c0_17 = arith.constant 0 : index
      %26 = vector.load %arg2[%c0_16, %c0_17] : memref<128x128xf32, #tpu.memory_space<vmem>>, vector<128x128xf32>
      %27 = arith.mulf %26, %26 : vector<128x128xf32>
      %cst_18 = arith.constant dense<0.000000e+00> : vector<128xf32>
      %28 = vector.multi_reduction <add>, %27, %cst_18 [1] : vector<128x128xf32> to vector<128xf32>
      %29 = vector.shape_cast %28 : vector<128xf32> to vector<128x1xf32>
      %cst_19 = arith.constant 3.125000e-02 : f32
      %30 = vector.broadcast %cst_19 : f32 to vector<128x1xf32>
      %31 = arith.mulf %29, %30 : vector<128x1xf32>
      %cst_20 = arith.constant 1.1920929E-7 : f32
      %32 = vector.broadcast %cst_20 : f32 to vector<128x1xf32>
      %33 = arith.addf %31, %32 : vector<128x1xf32>
      %34 = math.rsqrt %33 : vector<128x1xf32>
      %35 = vector.broadcast %34 : vector<128x1xf32> to vector<128x128xf32>
      %36 = arith.mulf %26, %35 : vector<128x128xf32>
      %37 = arith.truncf %36 : vector<128x128xf32> to vector<128x128xbf16>
      %c0_21 = arith.constant 0 : index
      %c0_22 = arith.constant 0 : index
      %38 = vector.load %arg6[%c0_21, %c0_22] : memref<128x128xbf16, #tpu.memory_space<vmem>>, vector<128x128xbf16>
      tpu.vector_store %arg6[%c0_21, %c0_22], %37 {strides = array<i32>} : memref<128x128xbf16, #tpu.memory_space<vmem>>, vector<128x128xbf16>,
      %cst_23 = arith.constant 0.000000e+00 : f32
      %39 = vector.broadcast %cst_23 : f32 to vector<128x128xf32>
      %c0_24 = arith.constant 0 : index
      %c0_25 = arith.constant 0 : index
      %40 = vector.load %arg7[%c0_24, %c0_25] : memref<128x128xf32, #tpu.memory_space<vmem>>, vector<128x128xf32>
      tpu.vector_store %arg7[%c0_24, %c0_25], %39 {strides = array<i32>} : memref<128x128xf32, #tpu.memory_space<vmem>>, vector<128x128xf32>,
    } else {
    }
    %c0 = arith.constant 0 : index
    %c0_1 = arith.constant 0 : index
    %3 = vector.load %arg6[%c0, %c0_1] : memref<128x128xbf16, #tpu.memory_space<vmem>>, vector<128x128xbf16>
    %c0_2 = arith.constant 0 : index
    %c0_3 = arith.constant 0 : index
    %4 = vector.load %arg3[%c0_2, %c0_3] : memref<128x256xbf16, #tpu.memory_space<vmem>>, vector<128x256xbf16>
    %cst = arith.constant dense<0.000000e+00> : vector<128x256xf32>
    %5 = tpu.matmul %3, %4, %cst {dimension_numbers = #tpu.dot_dimension_numbers<[1], [0], [0], [1], [0, 0, 1, 1], [], []>} : vector<128x128xbf16>, vector<128x256xbf16>, vector<128x256xf32> -> vector<128x256xf32>
    %6 = vector.extract_strided_slice %5 {offsets = [0, 0], sizes = [128, 128], strides = [1, 1]} : vector<128x256xf32> to vector<128x128xf32>
    %7 = vector.extract_strided_slice %5 {offsets = [0, 128], sizes = [128, 128], strides = [1, 1]} : vector<128x256xf32> to vector<128x128xf32>
    %cst_4 = arith.constant 5.000000e-01 : f32
    %8 = vector.broadcast %cst_4 : f32 to vector<128x128xf32>
    %9 = arith.mulf %8, %7 : vector<128x128xf32>
    %cst_5 = arith.constant 0.707106769 : f32
    %10 = vector.broadcast %cst_5 : f32 to vector<128x128xf32>
    %11 = arith.mulf %7, %10 : vector<128x128xf32>
    %12 = math.erf %11 : vector<128x128xf32>
    %cst_6 = arith.constant 1.000000e+00 : f32
    %13 = vector.broadcast %cst_6 : f32 to vector<128x128xf32>
    %14 = arith.addf %13, %12 : vector<128x128xf32>
    %15 = arith.mulf %9, %14 : vector<128x128xf32>
    %16 = arith.mulf %6, %15 : vector<128x128xf32>
    %17 = arith.truncf %16 : vector<128x128xf32> to vector<128x128xbf16>
    %c0_7 = arith.constant 0 : index
    %c0_8 = arith.constant 0 : index
    %18 = vector.load %arg7[%c0_7, %c0_8] : memref<128x128xf32, #tpu.memory_space<vmem>>, vector<128x128xf32>
    %c0_9 = arith.constant 0 : index
    %c0_10 = arith.constant 0 : index
    %19 = vector.load %arg4[%c0_9, %c0_10] : memref<128x128xbf16, #tpu.memory_space<vmem>>, vector<128x128xbf16>
    %cst_11 = arith.constant dense<0.000000e+00> : vector<128x128xf32>
    %20 = tpu.matmul %17, %19, %cst_11 {dimension_numbers = #tpu.dot_dimension_numbers<[1], [0], [0], [1], [0, 0, 1, 1], [], []>} : vector<128x128xbf16>, vector<128x128xbf16>, vector<128x128xf32> -> vector<128x128xf32>
    %21 = arith.addf %18, %20 : vector<128x128xf32>
    %c0_12 = arith.constant 0 : index
    %c0_13 = arith.constant 0 : index
    %22 = vector.load %arg7[%c0_12, %c0_13] : memref<128x128xf32, #tpu.memory_space<vmem>>, vector<128x128xf32>
    tpu.vector_store %arg7[%c0_12, %c0_13], %21 {strides = array<i32>} : memref<128x128xf32, #tpu.memory_space<vmem>>, vector<128x128xf32>,
    %c0_i32_14 = arith.constant 0 : i32
    %23 = arith.cmpi eq, %arg1, %c0_i32_14 : i32
    %24 = arith.extui %23 : i1 to i32
    %c0_i32_15 = arith.constant 0 : i32
    %25 = arith.cmpi ne, %24, %c0_i32_15 : i32
    scf.if %25 {
      %c0_16 = arith.constant 0 : index
      %c0_17 = arith.constant 0 : index
      %26 = vector.load %arg7[%c0_16, %c0_17] : memref<128x128xf32, #tpu.memory_space<vmem>>, vector<128x128xf32>
      %c0_18 = arith.constant 0 : index
      %c0_19 = arith.constant 0 : index
      %27 = vector.load %arg5[%c0_18, %c0_19] : memref<128x128xf32, #tpu.memory_space<vmem>>, vector<128x128xf32>
      tpu.vector_store %arg5[%c0_18, %c0_19], %26 {strides = array<i32>} : memref<128x128xf32, #tpu.memory_space<vmem>>, vector<128x128xf32>,
    } else {
    }
    return
  }
  func.func @transform_0(%arg0: i32, %arg1: i32) -> (i32, i32) {
    %c0_i32 = arith.constant 0 : i32
    %c0_i32_0 = arith.constant 0 : i32
    return %arg0, %c0_i32 : i32, i32
  }
  func.func @transform_1(%arg0: i32, %arg1: i32) -> (i32, i32) {
    %c0_i32 = arith.constant 0 : i32
    %c0_i32_0 = arith.constant 0 : i32
    return %c0_i32, %arg1 : i32, i32
  }
  func.func @transform_2(%arg0: i32, %arg1: i32) -> (i32, i32) {
    %c0_i32 = arith.constant 0 : i32
    %c0_i32_0 = arith.constant 0 : i32
    return %arg1, %c0_i32 : i32, i32
  }
  func.func @transform_3(%arg0: i32, %arg1: i32) -> (i32, i32) {
    %c0_i32 = arith.constant 0 : i32
    %c0_i32_0 = arith.constant 0 : i32
    return %arg0, %c0_i32 : i32, i32
  }
}

</mosaic_0001>

<llo_original>
// kernel: tpu_custom_call.1
$region0: #{tpu_custom_call.1}
  #allocation0 [shape = 'u32[]', space=smem, size = 0x4, offset = 0x4, fixed_abs, tag = 'smem constant byte address 0x4 - core index']
  #allocation1 [shape = 'u32[72,128]{1,0:T(1,128)}', space=vmem, size = 0x9000, scoped, tag = 'internal scratch']
  #allocation2 [shape = 'bf16[128,128]{1,0:T(8,128)(2,1)}', space=vmem, size = 0x8000, scoped, tag = 'scratch operand']
  #allocation3 [shape = 'f32[128,128]{1,0:T(8,128)}', space=vmem, size = 0x10000, scoped, tag = 'scratch operand']
  %s0 = inlined_call_operand.hbm [shape: f32[128,128], index: 0, kind: input, shape index: {}]
  %s1 = inlined_call_operand.hbm [shape: bf16[128,256], index: 1, kind: input, shape index: {}]
  %s2 = inlined_call_operand.hbm [shape: bf16[128,128], index: 2, kind: input, shape index: {}]
  %s3 = inlined_call_operand.hbm [shape: f32[128,128], index: 3, kind: output, shape index: {}]
  %s4 = sld [smem:[#allocation0]]
  $region42: #{tpu_custom_call.1} parent=0
    _
  %s6 = ssub.s32 1, %s4
  %s7 = scalar_select 0, %s6, %s4
  $region1: #{tpu_custom_call.1} parent=0
    #allocation4 [shape = 'u8[65536]{0}', space=vmem, size = 0x10000, scoped, tag = 'input window, operand 0, single buffered']
    #allocation5 [shape = 's32[1]{0}', space=sflag, size = 0x4, scoped, tag = 'scoped memory for tpu_custom_call.1']
    #allocation6 [shape = 's32[1]{0}', space=sflag, size = 0x4, scoped, tag = 'scoped memory for tpu_custom_call.1']
    #allocation7 [shape = 'u8[65536]{0}', space=vmem, size = 0x10000, scoped, tag = 'input window, operand 1, single buffered']
    #allocation8 [shape = 's32[1]{0}', space=sflag, size = 0x4, scoped, tag = 'scoped memory for tpu_custom_call.1']
    #allocation9 [shape = 'u8[32768]{0}', space=vmem, size = 0x8000, scoped, tag = 'input window, operand 2, single buffered']
    #allocation10 [shape = 'u8[65536]{0}', space=vmem, size = 0x10000, scoped, tag = 'output window, operand 0, single buffered']
    %8 = vsyncpa [#allocation5], 0
    %9 = vsyncpa [#allocation8], 0
    %10 = vsyncpa [#allocation6], 0
    // Predicated region
    $region2: #{tpu_custom_call.1} parent=1 // pred_check
      _
    $region3: #{tpu_custom_call.1} parent=1 // pred_check_branch
      %12 = sbr.rel (0) target = $region5
    $region4: #{tpu_custom_call.1} parent=1 // pred_region
      %14 = vsyncadd [#allocation5], 0
      %s15 = sshll.u32 %s0, 4
      %s16 = int_to_ptr.hbm [resolvable:$true] %s15
      %s17 = sshll.u32 [#allocation4], 4
      %s18 = int_to_ptr.vmem [resolvable:$true] %s17
      %23 = dma.hbm_to_vmem [thread:$0]  %s16, 2048, %s18, [#allocation5], 128, 128, 8
    $region5: #{tpu_custom_call.1} parent=1 // pred_fallthru
      _
    // Predicated region
    $region6: #{tpu_custom_call.1} parent=1 // pred_check
      _
    $region7: #{tpu_custom_call.1} parent=1 // pred_check_branch
      %25 = sbr.rel (0) target = $region9
    $region8: #{tpu_custom_call.1} parent=1 // pred_region
      %27 = vsyncadd [#allocation8], 0
      %s28 = sshll.u32 %s1, 4
      %s29 = int_to_ptr.hbm [resolvable:$true] %s28
      %s30 = sshll.u32 [#allocation7], 4
      %s31 = int_to_ptr.vmem [resolvable:$true] %s30
      %36 = dma.hbm_to_vmem [thread:$0]  %s29, 2048, %s31, [#allocation8], 128, 128, 8
    $region9: #{tpu_custom_call.1} parent=1 // pred_fallthru
      _
    // Predicated region
    $region10: #{tpu_custom_call.1} parent=1 // pred_check
      _
    $region11: #{tpu_custom_call.1} parent=1 // pred_check_branch
      %38 = sbr.rel (0) target = $region13
    $region12: #{tpu_custom_call.1} parent=1 // pred_region
      %40 = vsyncadd [#allocation8], 0
      %s41 = sshll.u32 %s2, 4
      %s42 = int_to_ptr.hbm [resolvable:$true] %s41
      %s43 = sshll.u32 [#allocation9], 4
      %s44 = int_to_ptr.vmem [resolvable:$true] %s43
      %49 = dma.hbm_to_vmem [thread:$0]  %s42, 1024, %s44, [#allocation8], 64, 64, 4
    $region13: #{tpu_custom_call.1} parent=1 // pred_fallthru
      _
    // Predicated region
    $region14: #{tpu_custom_call.1} parent=1 // pred_check
      _
    $region15: #{tpu_custom_call.1} parent=1 // pred_check_branch
      %51 = sbr.rel (0) target = $region17
    $region16: #{tpu_custom_call.1} parent=1 // pred_region
      %53 = dma.done [#allocation5], 2048
    $region17: #{tpu_custom_call.1} parent=1 // pred_fallthru
      _
    // Predicated region
    $region18: #{tpu_custom_call.1} parent=1 // pred_check
      _
    $region19: #{tpu_custom_call.1} parent=1 // pred_check_branch
      %55 = sbr.rel (0) target = $region21
    $region20: #{tpu_custom_call.1} parent=1 // pred_region
      %57 = dma.done [#allocation8], 2048
    $region21: #{tpu_custom_call.1} parent=1 // pred_fallthru
      _
    // Predicated region
    $region22: #{tpu_custom_call.1} parent=1 // pred_check
      _
    $region23: #{tpu_custom_call.1} parent=1 // pred_check_branch
      %59 = sbr.rel (0) target = $region25
    $region24: #{tpu_custom_call.1} parent=1 // pred_region
      %61 = dma.done [#allocation8], 1024
    $region25: #{tpu_custom_call.1} parent=1 // pred_fallthru
      _
    %p62 = scmp.eq.s32.totalorder 0, 0
    // Predicated region
    $region26: #{tpu_custom_call.1} parent=1 // pred_check
      %p63 = pneg %p62
    $region27: #{tpu_custom_call.1} parent=1 // pred_check_branch
      %65 = sbr.rel (%p63) target = $region29
    $region28: #{tpu_custom_call.1} parent=1 // pred_region
      %v66 = vld [vmem:[#allocation4] sm:$0xff]
      %v67 = vld [vmem:[#allocation4 + $0x8] sm:$0xff]
      %v68 = vld [vmem:[#allocation4 + $0x10] sm:$0xff]
      %v69 = vld [vmem:[#allocation4 + $0x18] sm:$0xff]
      %v70 = vld [vmem:[#allocation4 + $0x20] sm:$0xff]
      %v71 = vld [vmem:[#allocation4 + $0x28] sm:$0xff]
      %v72 = vld [vmem:[#allocation4 + $0x30] sm:$0xff]
      %v73 = vld [vmem:[#allocation4 + $0x38] sm:$0xff]
      %v74 = vld [vmem:[#allocation4 + $0x40] sm:$0xff]
      %v75 = vld [vmem:[#allocation4 + $0x48] sm:$0xff]
      %v76 = vld [vmem:[#allocation4 + $0x50] sm:$0xff]
      %v77 = vld [vmem:[#allocation4 + $0x58] sm:$0xff]
      %v78 = vld [vmem:[#allocation4 + $0x60] sm:$0xff]
      %v79 = vld [vmem:[#allocation4 + $0x68] sm:$0xff]
      %v80 = vld [vmem:[#allocation4 + $0x70] sm:$0xff]
      %v81 = vld [vmem:[#allocation4 + $0x78] sm:$0xff]
      %v82 = vmul.f32 %v66, %v66
      %v83 = vmul.f32 %v67, %v67
      %v84 = vmul.f32 %v68, %v68
      %v85 = vmul.f32 %v69, %v69
      %v86 = vmul.f32 %v70, %v70
      %v87 = vmul.f32 %v71, %v71
      %v88 = vmul.f32 %v72, %v72
      %v89 = vmul.f32 %v73, %v73
      %v90 = vmul.f32 %v74, %v74
      %v91 = vmul.f32 %v75, %v75
      %v92 = vmul.f32 %v76, %v76
      %v93 = vmul.f32 %v77, %v77
      %v94 = vmul.f32 %v78, %v78
      %v95 = vmul.f32 %v79, %v79
      %v96 = vmul.f32 %v80, %v80
      %v97 = vmul.f32 %v81, %v81
      %98 = vadd.xlane.f32.xlu0 %v82
      %v99 = vpop.xlane.xlu0 %98
      %100 = vadd.xlane.f32.xlu0 %v83
      %v101 = vpop.xlane.xlu0 %100
      %102 = vadd.xlane.f32.xlu0 %v84
      %v103 = vpop.xlane.xlu0 %102
      %104 = vadd.xlane.f32.xlu0 %v85
      %v105 = vpop.xlane.xlu0 %104
      %106 = vadd.xlane.f32.xlu0 %v86
      %v107 = vpop.xlane.xlu0 %106
      %108 = vadd.xlane.f32.xlu0 %v87
      %v109 = vpop.xlane.xlu0 %108
      %110 = vadd.xlane.f32.xlu0 %v88
      %v111 = vpop.xlane.xlu0 %110
      %112 = vadd.xlane.f32.xlu0 %v89
      %v113 = vpop.xlane.xlu0 %112
      %114 = vadd.xlane.f32.xlu0 %v90
      %v115 = vpop.xlane.xlu0 %114
      %116 = vadd.xlane.f32.xlu0 %v91
      %v117 = vpop.xlane.xlu0 %116
      %118 = vadd.xlane.f32.xlu0 %v92
      %v119 = vpop.xlane.xlu0 %118
      %120 = vadd.xlane.f32.xlu0 %v93
      %v121 = vpop.xlane.xlu0 %120
      %122 = vadd.xlane.f32.xlu0 %v94
      %v123 = vpop.xlane.xlu0 %122
      %124 = vadd.xlane.f32.xlu0 %v95
      %v125 = vpop.xlane.xlu0 %124
      %126 = vadd.xlane.f32.xlu0 %v96
      %v127 = vpop.xlane.xlu0 %126
      %128 = vadd.xlane.f32.xlu0 %v97
      %v129 = vpop.xlane.xlu0 %128
      %v130 = vmul.f32 %v99, 0.03125
      %v131 = vmul.f32 %v101, 0.03125
      %v132 = vmul.f32 %v103, 0.03125
      %v133 = vmul.f32 %v105, 0.03125
      %v134 = vmul.f32 %v107, 0.03125
      %v135 = vmul.f32 %v109, 0.03125
      %v136 = vmul.f32 %v111, 0.03125
      %v137 = vmul.f32 %v113, 0.03125
      %v138 = vmul.f32 %v115, 0.03125
      %v139 = vmul.f32 %v117, 0.03125
      %v140 = vmul.f32 %v119, 0.03125
      %v141 = vmul.f32 %v121, 0.03125
      %v142 = vmul.f32 %v123, 0.03125
      %v143 = vmul.f32 %v125, 0.03125
      %v144 = vmul.f32 %v127, 0.03125
      %v145 = vmul.f32 %v129, 0.03125
      %v146 = vadd.f32 %v130, 1.1920929e-07
      %v147 = vadd.f32 %v131, 1.1920929e-07
      %v148 = vadd.f32 %v132, 1.1920929e-07
      %v149 = vadd.f32 %v133, 1.1920929e-07
      %v150 = vadd.f32 %v134, 1.1920929e-07
      %v151 = vadd.f32 %v135, 1.1920929e-07
      %v152 = vadd.f32 %v136, 1.1920929e-07
      %v153 = vadd.f32 %v137, 1.1920929e-07
      %v154 = vadd.f32 %v138, 1.1920929e-07
      %v155 = vadd.f32 %v139, 1.1920929e-07
      %v156 = vadd.f32 %v140, 1.1920929e-07
      %v157 = vadd.f32 %v141, 1.1920929e-07
      %v158 = vadd.f32 %v142, 1.1920929e-07
      %v159 = vadd.f32 %v143, 1.1920929e-07
      %v160 = vadd.f32 %v144, 1.1920929e-07
      %v161 = vadd.f32 %v145, 1.1920929e-07
      %v162 = vrsqrt.pop %v146
      %v163 = vmul.f32 %v162, %v146
      %v164 = vmul.f32 %v163, %v162
      %v165 = vmul.f32 0.5, %v164
      %v166 = vsub.f32 1.5, %v165
      %v167 = vmul.f32 %v162, %v166
      %vm168 = vweird.f32 %v146
      %vm169 = vweird.f32 %v162
      %vm170 = vmor %vm168, %vm169
      %v171 = vsel %vm170, %v162, %v167
      %v172 = vrsqrt.pop %v147
      %v173 = vmul.f32 %v172, %v147
      %v174 = vmul.f32 %v173, %v172
      %v175 = vmul.f32 0.5, %v174
      %v176 = vsub.f32 1.5, %v175
      %v177 = vmul.f32 %v172, %v176
      %vm178 = vweird.f32 %v147
      %vm179 = vweird.f32 %v172
      %vm180 = vmor %vm178, %vm179
      %v181 = vsel %vm180, %v172, %v177
      %v182 = vrsqrt.pop %v148
      %v183 = vmul.f32 %v182, %v148
      %v184 = vmul.f32 %v183, %v182
      %v185 = vmul.f32 0.5, %v184
      %v186 = vsub.f32 1.5, %v185
      %v187 = vmul.f32 %v182, %v186
      %vm188 = vweird.f32 %v148
      %vm189 = vweird.f32 %v182
      %vm190 = vmor %vm188, %vm189
      %v191 = vsel %vm190, %v182, %v187
      %v192 = vrsqrt.pop %v149
      %v193 = vmul.f32 %v192, %v149
      %v194 = vmul.f32 %v193, %v192
      %v195 = vmul.f32 0.5, %v194
      %v196 = vsub.f32 1.5, %v195
      %v197 = vmul.f32 %v192, %v196
      %vm198 = vweird.f32 %v149
      %vm199 = vweird.f32 %v192
      %vm200 = vmor %vm198, %vm199
      %v201 = vsel %vm200, %v192, %v197
      %v202 = vrsqrt.pop %v150
      %v203 = vmul.f32 %v202, %v150
      %v204 = vmul.f32 %v203, %v202
      %v205 = vmul.f32 0.5, %v204
      %v206 = vsub.f32 1.5, %v205
      %v207 = vmul.f32 %v202, %v206
      %vm208 = vweird.f32 %v150
      %vm209 = vweird.f32 %v202
      %vm210 = vmor %vm208, %vm209
      %v211 = vsel %vm210, %v202, %v207
      %v212 = vrsqrt.pop %v151
      %v213 = vmul.f32 %v212, %v151
      %v214 = vmul.f32 %v213, %v212
      %v215 = vmul.f32 0.5, %v214
      %v216 = vsub.f32 1.5, %v215
      %v217 = vmul.f32 %v212, %v216
      %vm218 = vweird.f32 %v151
      %vm219 = vweird.f32 %v212
      %vm220 = vmor %vm218, %vm219
      %v221 = vsel %vm220, %v212, %v217
      %v222 = vrsqrt.pop %v152
      %v223 = vmul.f32 %v222, %v152
      %v224 = vmul.f32 %v223, %v222
      %v225 = vmul.f32 0.5, %v224
      %v226 = vsub.f32 1.5, %v225
      %v227 = vmul.f32 %v222, %v226
      %vm228 = vweird.f32 %v152
      %vm229 = vweird.f32 %v222
      %vm230 = vmor %vm228, %vm229
      %v231 = vsel %vm230, %v222, %v227
      %v232 = vrsqrt.pop %v153
      %v233 = vmul.f32 %v232, %v153
      %v234 = vmul.f32 %v233, %v232
      %v235 = vmul.f32 0.5, %v234
      %v236 = vsub.f32 1.5, %v235
      %v237 = vmul.f32 %v232, %v236
      %vm238 = vweird.f32 %v153
      %vm239 = vweird.f32 %v232
      %vm240 = vmor %vm238, %vm239
      %v241 = vsel %vm240, %v232, %v237
      %v242 = vrsqrt.pop %v154
      %v243 = vmul.f32 %v242, %v154
      %v244 = vmul.f32 %v243, %v242
      %v245 = vmul.f32 0.5, %v244
      %v246 = vsub.f32 1.5, %v245
      %v247 = vmul.f32 %v242, %v246
      %vm248 = vweird.f32 %v154
      %vm249 = vweird.f32 %v242
      %vm250 = vmor %vm248, %vm249
      %v251 = vsel %vm250, %v242, %v247
      %v252 = vrsqrt.pop %v155
      %v253 = vmul.f32 %v252, %v155
      %v254 = vmul.f32 %v253, %v252
      %v255 = vmul.f32 0.5, %v254
      %v256 = vsub.f32 1.5, %v255
      %v257 = vmul.f32 %v252, %v256
      %vm258 = vweird.f32 %v155
      %vm259 = vweird.f32 %v252
      %vm260 = vmor %vm258, %vm259
      %v261 = vsel %vm260, %v252, %v257
      %v262 = vrsqrt.pop %v156
      %v263 = vmul.f32 %v262, %v156
      %v264 = vmul.f32 %v263, %v262
      %v265 = vmul.f32 0.5, %v264
      %v266 = vsub.f32 1.5, %v265
      %v267 = vmul.f32 %v262, %v266
      %vm268 = vweird.f32 %v156
      %vm269 = vweird.f32 %v262
      %vm270 = vmor %vm268, %vm269
      %v271 = vsel %vm270, %v262, %v267
      %v272 = vrsqrt.pop %v157
      %v273 = vmul.f32 %v272, %v157
      %v274 = vmul.f32 %v273, %v272
      %v275 = vmul.f32 0.5, %v274
      %v276 = vsub.f32 1.5, %v275
      %v277 = vmul.f32 %v272, %v276
      %vm278 = vweird.f32 %v157
      %vm279 = vweird.f32 %v272
      %vm280 = vmor %vm278, %vm279
      %v281 = vsel %vm280, %v272, %v277
      %v282 = vrsqrt.pop %v158
      %v283 = vmul.f32 %v282, %v158
      %v284 = vmul.f32 %v283, %v282
      %v285 = vmul.f32 0.5, %v284
      %v286 = vsub.f32 1.5, %v285
      %v287 = vmul.f32 %v282, %v286
      %vm288 = vweird.f32 %v158
      %vm289 = vweird.f32 %v282
      %vm290 = vmor %vm288, %vm289
      %v291 = vsel %vm290, %v282, %v287
      %v292 = vrsqrt.pop %v159
      %v293 = vmul.f32 %v292, %v159
      %v294 = vmul.f32 %v293, %v292
      %v295 = vmul.f32 0.5, %v294
      %v296 = vsub.f32 1.5, %v295
      %v297 = vmul.f32 %v292, %v296
      %vm298 = vweird.f32 %v159
      %vm299 = vweird.f32 %v292
      %vm300 = vmor %vm298, %vm299
      %v301 = vsel %vm300, %v292, %v297
      %v302 = vrsqrt.pop %v160
      %v303 = vmul.f32 %v302, %v160
      %v304 = vmul.f32 %v303, %v302
      %v305 = vmul.f32 0.5, %v304
      %v306 = vsub.f32 1.5, %v305
      %v307 = vmul.f32 %v302, %v306
      %vm308 = vweird.f32 %v160
      %vm309 = vweird.f32 %v302
      %vm310 = vmor %vm308, %vm309
      %v311 = vsel %vm310, %v302, %v307
      %v312 = vrsqrt.pop %v161
      %v313 = vmul.f32 %v312, %v161
      %v314 = vmul.f32 %v313, %v312
      %v315 = vmul.f32 0.5, %v314
      %v316 = vsub.f32 1.5, %v315
      %v317 = vmul.f32 %v312, %v316
      %vm318 = vweird.f32 %v161
      %vm319 = vweird.f32 %v312
      %vm320 = vmor %vm318, %vm319
      %v321 = vsel %vm320, %v312, %v317
      %v322 = vmul.f32 %v66, %v171
      %v323 = vmul.f32 %v67, %v181
      %v324 = vmul.f32 %v68, %v191
      %v325 = vmul.f32 %v69, %v201
      %v326 = vmul.f32 %v70, %v211
      %v327 = vmul.f32 %v71, %v221
      %v328 = vmul.f32 %v72, %v231
      %v329 = vmul.f32 %v73, %v241
      %v330 = vmul.f32 %v74, %v251
      %v331 = vmul.f32 %v75, %v261
      %v332 = vmul.f32 %v76, %v271
      %v333 = vmul.f32 %v77, %v281
      %v334 = vmul.f32 %v78, %v291
      %v335 = vmul.f32 %v79, %v301
      %v336 = vmul.f32 %v80, %v311
      %v337 = vmul.f32 %v81, %v321
      %v338 = vpack.c.bf16 %v322, %v322
      %v339 = vpack.c.bf16 %v323, %v323
      %v340 = vpack.c.bf16 %v324, %v324
      %v341 = vpack.c.bf16 %v325, %v325
      %v342 = vpack.c.bf16 %v326, %v326
      %v343 = vpack.c.bf16 %v327, %v327
      %v344 = vpack.c.bf16 %v328, %v328
      %v345 = vpack.c.bf16 %v329, %v329
      %v346 = vpack.c.bf16 %v330, %v330
      %v347 = vpack.c.bf16 %v331, %v331
      %v348 = vpack.c.bf16 %v332, %v332
      %v349 = vpack.c.bf16 %v333, %v333
      %v350 = vpack.c.bf16 %v334, %v334
      %v351 = vpack.c.bf16 %v335, %v335
      %v352 = vpack.c.bf16 %v336, %v336
      %v353 = vpack.c.bf16 %v337, %v337
      %354 = vst [vmem:[#allocation2] sm:$0xf] %v338
      %355 = vst [vmem:[#allocation2 + $0x4] sm:$0xf] %v339
      %356 = vst [vmem:[#allocation2 + $0x8] sm:$0xf] %v340
      %357 = vst [vmem:[#allocation2 + $0xc] sm:$0xf] %v341
      %358 = vst [vmem:[#allocation2 + $0x10] sm:$0xf] %v342
      %359 = vst [vmem:[#allocation2 + $0x14] sm:$0xf] %v343
      %360 = vst [vmem:[#allocation2 + $0x18] sm:$0xf] %v344
      %361 = vst [vmem:[#allocation2 + $0x1c] sm:$0xf] %v345
      %362 = vst [vmem:[#allocation2 + $0x20] sm:$0xf] %v346
      %363 = vst [vmem:[#allocation2 + $0x24] sm:$0xf] %v347
      %364 = vst [vmem:[#allocation2 + $0x28] sm:$0xf] %v348
      %365 = vst [vmem:[#allocation2 + $0x2c] sm:$0xf] %v349
      %366 = vst [vmem:[#allocation2 + $0x30] sm:$0xf] %v350
      %367 = vst [vmem:[#allocation2 + $0x34] sm:$0xf] %v351
      %368 = vst [vmem:[#allocation2 + $0x38] sm:$0xf] %v352
      %369 = vst [vmem:[#allocation2 + $0x3c] sm:$0xf] %v353
      %370 = vst [vmem:[#allocation3] sm:$0xff] 0.0
      %371 = vst [vmem:[#allocation3 + $0x8] sm:$0xff] 0.0
      %372 = vst [vmem:[#allocation3 + $0x10] sm:$0xff] 0.0
      %373 = vst [vmem:[#allocation3 + $0x18] sm:$0xff] 0.0
      %374 = vst [vmem:[#allocation3 + $0x20] sm:$0xff] 0.0
      %375 = vst [vmem:[#allocation3 + $0x28] sm:$0xff] 0.0
      %376 = vst [vmem:[#allocation3 + $0x30] sm:$0xff] 0.0
      %377 = vst [vmem:[#allocation3 + $0x38] sm:$0xff] 0.0
      %378 = vst [vmem:[#allocation3 + $0x40] sm:$0xff] 0.0
      %379 = vst [vmem:[#allocation3 + $0x48] sm:$0xff] 0.0
      %380 = vst [vmem:[#allocation3 + $0x50] sm:$0xff] 0.0
      %381 = vst [vmem:[#allocation3 + $0x58] sm:$0xff] 0.0
      %382 = vst [vmem:[#allocation3 + $0x60] sm:$0xff] 0.0
      %383 = vst [vmem:[#allocation3 + $0x68] sm:$0xff] 0.0
      %384 = vst [vmem:[#allocation3 + $0x70] sm:$0xff] 0.0
      %385 = vst [vmem:[#allocation3 + $0x78] sm:$0xff] 0.0
    $region29: #{tpu_custom_call.1} parent=1 // pred_fallthru
      _
    %v386 = vld [vmem:[#allocation2] sm:$0xf]
    %v387 = vld [vmem:[#allocation2 + $0x4] sm:$0xf]
    %v388 = vld [vmem:[#allocation2 + $0x8] sm:$0xf]
    %v389 = vld [vmem:[#allocation2 + $0xc] sm:$0xf]
    %v390 = vld [vmem:[#allocation2 + $0x10] sm:$0xf]
    %v391 = vld [vmem:[#allocation2 + $0x14] sm:$0xf]
    %v392 = vld [vmem:[#allocation2 + $0x18] sm:$0xf]
    %v393 = vld [vmem:[#allocation2 + $0x1c] sm:$0xf]
    %v394 = vld [vmem:[#allocation2 + $0x20] sm:$0xf]
    %v395 = vld [vmem:[#allocation2 + $0x24] sm:$0xf]
    %v396 = vld [vmem:[#allocation2 + $0x28] sm:$0xf]
    %v397 = vld [vmem:[#allocation2 + $0x2c] sm:$0xf]
    %v398 = vld [vmem:[#allocation2 + $0x30] sm:$0xf]
    %v399 = vld [vmem:[#allocation2 + $0x34] sm:$0xf]
    %v400 = vld [vmem:[#allocation2 + $0x38] sm:$0xf]
    %v401 = vld [vmem:[#allocation2 + $0x3c] sm:$0xf]
    %v402 = vld [vmem:[#allocation7] sm:$0xff]
    %v403 = vld [vmem:[#allocation7 + $0x8] sm:$0xff]
    %v404 = vld [vmem:[#allocation7 + $0x10] sm:$0xff]
    %v405 = vld [vmem:[#allocation7 + $0x18] sm:$0xff]
    %v406 = vld [vmem:[#allocation7 + $0x20] sm:$0xff]
    %v407 = vld [vmem:[#allocation7 + $0x28] sm:$0xff]
    %v408 = vld [vmem:[#allocation7 + $0x30] sm:$0xff]
    %v409 = vld [vmem:[#allocation7 + $0x38] sm:$0xff]
    %v410 = vld [vmem:[#allocation7 + $0x40] sm:$0xff]
    %v411 = vld [vmem:[#allocation7 + $0x48] sm:$0xff]
    %v412 = vld [vmem:[#allocation7 + $0x50] sm:$0xff]
    %v413 = vld [vmem:[#allocation7 + $0x58] sm:$0xff]
    %v414 = vld [vmem:[#allocation7 + $0x60] sm:$0xff]
    %v415 = vld [vmem:[#allocation7 + $0x68] sm:$0xff]
    %v416 = vld [vmem:[#allocation7 + $0x70] sm:$0xff]
    %v417 = vld [vmem:[#allocation7 + $0x78] sm:$0xff]
    %v434 = vunpack.c.l.b16 %v386
    %v435 = vunpack.c.l.b16 %v387
    %v436 = vunpack.c.l.b16 %v388
    %v437 = vunpack.c.l.b16 %v389
    %v438 = vunpack.c.l.b16 %v390
    %v439 = vunpack.c.l.b16 %v391
    %v440 = vunpack.c.l.b16 %v392
    %v441 = vunpack.c.l.b16 %v393
    %v442 = vunpack.c.l.b16 %v394
    %v443 = vunpack.c.l.b16 %v395
    %v444 = vunpack.c.l.b16 %v396
    %v445 = vunpack.c.l.b16 %v397
    %v446 = vunpack.c.l.b16 %v398
    %v447 = vunpack.c.l.b16 %v399
    %v448 = vunpack.c.l.b16 %v400
    %v449 = vunpack.c.l.b16 %v401
    %v450 = vpack.c.b16 %v435, %v434
    %v451 = vpack.c.b16 %v437, %v436
    %v452 = vpack.c.b16 %v439, %v438
    %v453 = vpack.c.b16 %v441, %v440
    %v454 = vpack.c.b16 %v443, %v442
    %v455 = vpack.c.b16 %v445, %v444
    %v456 = vpack.c.b16 %v447, %v446
    %v457 = vpack.c.b16 %v449, %v448
    %v482 = vunpack.c.l.b16 %v402
    %v483 = vunpack.c.h.b16 %v402
    %v484 = vunpack.c.l.b16 %v403
    %v485 = vunpack.c.h.b16 %v403
    %v486 = vunpack.c.l.b16 %v404
    %v487 = vunpack.c.h.b16 %v404
    %v488 = vunpack.c.l.b16 %v405
    %v489 = vunpack.c.h.b16 %v405
    %v490 = vunpack.c.l.b16 %v406
    %v491 = vunpack.c.h.b16 %v406
    %v492 = vunpack.c.l.b16 %v407
    %v493 = vunpack.c.h.b16 %v407
    %v494 = vunpack.c.l.b16 %v408
    %v495 = vunpack.c.h.b16 %v408
    %v496 = vunpack.c.l.b16 %v409
    %v497 = vunpack.c.h.b16 %v409
    %v498 = vunpack.c.l.b16 %v410
    %v499 = vunpack.c.h.b16 %v410
    %v500 = vunpack.c.l.b16 %v411
    %v501 = vunpack.c.h.b16 %v411
    %v502 = vunpack.c.l.b16 %v412
    %v503 = vunpack.c.h.b16 %v412
    %v504 = vunpack.c.l.b16 %v413
    %v505 = vunpack.c.h.b16 %v413
    %v506 = vunpack.c.l.b16 %v414
    %v507 = vunpack.c.h.b16 %v414
    %v508 = vunpack.c.l.b16 %v415
    %v509 = vunpack.c.h.b16 %v415
    %v510 = vunpack.c.l.b16 %v416
    %v511 = vunpack.c.h.b16 %v416
    %v512 = vunpack.c.l.b16 %v417
    %v513 = vunpack.c.h.b16 %v417
    %v514 = vpack.c.b16 %v484, %v482
    %v515 = vpack.c.b16 %v485, %v483
    %v516 = vpack.c.b16 %v488, %v486
    %v517 = vpack.c.b16 %v489, %v487
    %v518 = vpack.c.b16 %v492, %v490
    %v519 = vpack.c.b16 %v493, %v491
    %v520 = vpack.c.b16 %v496, %v494
    %v521 = vpack.c.b16 %v497, %v495
    %v522 = vpack.c.b16 %v500, %v498
    %v523 = vpack.c.b16 %v501, %v499
    %v524 = vpack.c.b16 %v504, %v502
    %v525 = vpack.c.b16 %v505, %v503
    %v526 = vpack.c.b16 %v508, %v506
    %v527 = vpack.c.b16 %v509, %v507
    %v528 = vpack.c.b16 %v512, %v510
    %v529 = vpack.c.b16 %v513, %v511
    %546 = vmatpush.bf16.msra.mxu0 %v528
    %547 = vmatpush.bf16.msra.mxu0 %v526
    %548 = vmatpush.bf16.msra.mxu0 %v524
    %549 = vmatpush.bf16.msra.mxu0 %v522
    %550 = vmatpush.bf16.msra.mxu0 %v520
    %551 = vmatpush.bf16.msra.mxu0 %v518
    %552 = vmatpush.bf16.msra.mxu0 %v516
    %553 = vmatpush.bf16.msra.mxu0 %v514
    %554 = vmatmul.bf16.gmra.mxu0 %v450
    %v555 = vpop.f32.mrf.mxu0
    %v556 = vadd.f32 0.0, %v555
    %v557 = vpop.f32.mrf.mxu0
    %v558 = vadd.f32 0.0, %v557
    %559 = vmatmul.bf16.gmra.mxu0 %v451
    %v560 = vpop.f32.mrf.mxu0
    %v561 = vadd.f32 0.0, %v560
    %v562 = vpop.f32.mrf.mxu0
    %v563 = vadd.f32 0.0, %v562
    %564 = vmatmul.bf16.gmra.mxu0 %v452
    %v565 = vpop.f32.mrf.mxu0
    %v566 = vadd.f32 0.0, %v565
    %v567 = vpop.f32.mrf.mxu0
    %v568 = vadd.f32 0.0, %v567
    %569 = vmatmul.bf16.gmra.mxu0 %v453
    %v570 = vpop.f32.mrf.mxu0
    %v571 = vadd.f32 0.0, %v570
    %v572 = vpop.f32.mrf.mxu0
    %v573 = vadd.f32 0.0, %v572
    %574 = vmatmul.bf16.gmra.mxu0 %v454
    %v575 = vpop.f32.mrf.mxu0
    %v576 = vadd.f32 0.0, %v575
    %v577 = vpop.f32.mrf.mxu0
    %v578 = vadd.f32 0.0, %v577
    %579 = vmatmul.bf16.gmra.mxu0 %v455
    %v580 = vpop.f32.mrf.mxu0
    %v581 = vadd.f32 0.0, %v580
    %v582 = vpop.f32.mrf.mxu0
    %v583 = vadd.f32 0.0, %v582
    %584 = vmatmul.bf16.gmra.mxu0 %v456
    %v585 = vpop.f32.mrf.mxu0
    %v586 = vadd.f32 0.0, %v585
    %v587 = vpop.f32.mrf.mxu0
    %v588 = vadd.f32 0.0, %v587
    %589 = vmatmul.bf16.gmra.mxu0 %v457
    %v590 = vpop.f32.mrf.mxu0
    %v591 = vadd.f32 0.0, %v590
    %v592 = vpop.f32.mrf.mxu0
    %v593 = vadd.f32 0.0, %v592
    %594 = vdwg.mxu0
    %595 = vmatpush.bf16.msra.mxu0 %v529
    %596 = vmatpush.bf16.msra.mxu0 %v527
    %597 = vmatpush.bf16.msra.mxu0 %v525
    %598 = vmatpush.bf16.msra.mxu0 %v523
    %599 = vmatpush.bf16.msra.mxu0 %v521
    %600 = vmatpush.bf16.msra.mxu0 %v519
    %601 = vmatpush.bf16.msra.mxu0 %v517
    %602 = vmatpush.bf16.msra.mxu0 %v515
    %603 = vmatmul.bf16.gmra.mxu0 %v450
    %v604 = vpop.f32.mrf.mxu0
    %v605 = vadd.f32 0.0, %v604
    %v606 = vpop.f32.mrf.mxu0
    %v607 = vadd.f32 0.0, %v606
    %608 = vmatmul.bf16.gmra.mxu0 %v451
    %v609 = vpop.f32.mrf.mxu0
    %v610 = vadd.f32 0.0, %v609
    %v611 = vpop.f32.mrf.mxu0
    %v612 = vadd.f32 0.0, %v611
    %613 = vmatmul.bf16.gmra.mxu0 %v452
    %v614 = vpop.f32.mrf.mxu0
    %v615 = vadd.f32 0.0, %v614
    %v616 = vpop.f32.mrf.mxu0
    %v617 = vadd.f32 0.0, %v616
    %618 = vmatmul.bf16.gmra.mxu0 %v453
    %v619 = vpop.f32.mrf.mxu0
    %v620 = vadd.f32 0.0, %v619
    %v621 = vpop.f32.mrf.mxu0
    %v622 = vadd.f32 0.0, %v621
    %623 = vmatmul.bf16.gmra.mxu0 %v454
    %v624 = vpop.f32.mrf.mxu0
    %v625 = vadd.f32 0.0, %v624
    %v626 = vpop.f32.mrf.mxu0
    %v627 = vadd.f32 0.0, %v626
    %628 = vmatmul.bf16.gmra.mxu0 %v455
    %v629 = vpop.f32.mrf.mxu0
    %v630 = vadd.f32 0.0, %v629
    %v631 = vpop.f32.mrf.mxu0
    %v632 = vadd.f32 0.0, %v631
    %633 = vmatmul.bf16.gmra.mxu0 %v456
    %v634 = vpop.f32.mrf.mxu0
    %v635 = vadd.f32 0.0, %v634
    %v636 = vpop.f32.mrf.mxu0
    %v637 = vadd.f32 0.0, %v636
    %638 = vmatmul.bf16.gmra.mxu0 %v457
    %v639 = vpop.f32.mrf.mxu0
    %v640 = vadd.f32 0.0, %v639
    %v641 = vpop.f32.mrf.mxu0
    %v642 = vadd.f32 0.0, %v641
    %643 = vdwg.mxu0
    %v644 = vmul.f32 %v605, 0.5
    %v645 = vmul.f32 %v607, 0.5
    %v646 = vmul.f32 %v610, 0.5
    %v647 = vmul.f32 %v612, 0.5
    %v648 = vmul.f32 %v615, 0.5
    %v649 = vmul.f32 %v617, 0.5
    %v650 = vmul.f32 %v620, 0.5
    %v651 = vmul.f32 %v622, 0.5
    %v652 = vmul.f32 %v625, 0.5
    %v653 = vmul.f32 %v627, 0.5
    %v654 = vmul.f32 %v630, 0.5
    %v655 = vmul.f32 %v632, 0.5
    %v656 = vmul.f32 %v635, 0.5
    %v657 = vmul.f32 %v637, 0.5
    %v658 = vmul.f32 %v640, 0.5
    %v659 = vmul.f32 %v642, 0.5
    %v660 = vmul.f32 %v605, 0.70710677
    %v661 = vmul.f32 %v607, 0.70710677
    %v662 = vmul.f32 %v610, 0.70710677
    %v663 = vmul.f32 %v612, 0.70710677
    %v664 = vmul.f32 %v615, 0.70710677
    %v665 = vmul.f32 %v617, 0.70710677
    %v666 = vmul.f32 %v620, 0.70710677
    %v667 = vmul.f32 %v622, 0.70710677
    %v668 = vmul.f32 %v625, 0.70710677
    %v669 = vmul.f32 %v627, 0.70710677
    %v670 = vmul.f32 %v630, 0.70710677
    %v671 = vmul.f32 %v632, 0.70710677
    %v672 = vmul.f32 %v635, 0.70710677
    %v673 = vmul.f32 %v637, 0.70710677
    %v674 = vmul.f32 %v640, 0.70710677
    %v675 = vmul.f32 %v642, 0.70710677
    %v676 = vmul.f32 %v660, %v660
    %v677 = vmin.f32 16.0, %v676
    %v678 = vmul.f32 %v677, 2.1237322e-06
    %v679 = vadd.f32 %v678, 0.00028619796
    %v680 = vmul.f32 %v677, %v679
    %v681 = vadd.f32 %v680, 0.0036580483
    %v682 = vmul.f32 %v677, %v681
    %v683 = vadd.f32 %v682, 0.05243302
    %v684 = vmul.f32 %v677, %v683
    %v685 = vadd.f32 %v684, 0.18741608
    %v686 = vmul.f32 %v677, %v685
    %v687 = vadd.f32 %v686, 1.1283791
    %v688 = vmul.f32 %v660, %v687
    %v689 = vmul.f32 %v677, 3.8918573e-05
    %v690 = vadd.f32 %v689, 0.001143296
    %v691 = vmul.f32 %v677, %v690
    %v692 = vadd.f32 %v691, 0.014752088
    %v693 = vmul.f32 %v677, %v692
    %v694 = vadd.f32 %v693, 0.112945676
    %v695 = vmul.f32 %v677, %v694
    %v696 = vadd.f32 %v695, 0.4994258
    %v697 = vmul.f32 %v677, %v696
    %v698 = vadd.f32 %v697, 1.0
    %v699 = vrcp.pop %v698
    %v700 = vmul.f32 %v698, %v699
    %v701 = vsub.f32 1.0, %v700
    %v702 = vmul.f32 %v699, %v701
    %v703 = vadd.f32 %v699, %v702
    %vm704 = vweird.f32 %v698
    %vm705 = vweird.f32 %v699
    %vm706 = vmor %vm704, %vm705
    %v707 = vsel %vm706, %v699, %v703
    %v708 = vand.u32 2147483647, %v698
    %vm709 = vcmp.eq.f32.partialorder %v708, 8.507059e+37
    %v710 = vand.u32 %v698, 2147483648
    %v711 = vor.u32 1.1754944e-38, %v710
    %v712 = vsel %vm709, %v711, %v707
    %v713 = vmul.f32 %v688, %v712
    %v714 = vmin.f32 %v713, 1.0
    %v715 = vmax.f32 %v714, -1.0
    %v716 = vmul.f32 %v661, %v661
    %v717 = vmin.f32 16.0, %v716
    %v718 = vmul.f32 %v717, 2.1237322e-06
    %v719 = vadd.f32 %v718, 0.00028619796
    %v720 = vmul.f32 %v717, %v719
    %v721 = vadd.f32 %v720, 0.0036580483
    %v722 = vmul.f32 %v717, %v721
    %v723 = vadd.f32 %v722, 0.05243302
    %v724 = vmul.f32 %v717, %v723
    %v725 = vadd.f32 %v724, 0.18741608
    %v726 = vmul.f32 %v717, %v725
    %v727 = vadd.f32 %v726, 1.1283791
    %v728 = vmul.f32 %v661, %v727
    %v729 = vmul.f32 %v717, 3.8918573e-05
    %v730 = vadd.f32 %v729, 0.001143296
    %v731 = vmul.f32 %v717, %v730
    %v732 = vadd.f32 %v731, 0.014752088
    %v733 = vmul.f32 %v717, %v732
    %v734 = vadd.f32 %v733, 0.112945676
    %v735 = vmul.f32 %v717, %v734
    %v736 = vadd.f32 %v735, 0.4994258
    %v737 = vmul.f32 %v717, %v736
    %v738 = vadd.f32 %v737, 1.0
    %v739 = vrcp.pop %v738
    %v740 = vmul.f32 %v738, %v739
    %v741 = vsub.f32 1.0, %v740
    %v742 = vmul.f32 %v739, %v741
    %v743 = vadd.f32 %v739, %v742
    %vm744 = vweird.f32 %v738
    %vm745 = vweird.f32 %v739
    %vm746 = vmor %vm744, %vm745
    %v747 = vsel %vm746, %v739, %v743
    %v748 = vand.u32 2147483647, %v738
    %vm749 = vcmp.eq.f32.partialorder %v748, 8.507059e+37
    %v750 = vand.u32 %v738, 2147483648
    %v751 = vor.u32 1.1754944e-38, %v750
    %v752 = vsel %vm749, %v751, %v747
    %v753 = vmul.f32 %v728, %v752
    %v754 = vmin.f32 %v753, 1.0
    %v755 = vmax.f32 %v754, -1.0
    %v756 = vmul.f32 %v662, %v662
    %v757 = vmin.f32 16.0, %v756
    %v758 = vmul.f32 %v757, 2.1237322e-06
    %v759 = vadd.f32 %v758, 0.00028619796
    %v760 = vmul.f32 %v757, %v759
    %v761 = vadd.f32 %v760, 0.0036580483
    %v762 = vmul.f32 %v757, %v761
    %v763 = vadd.f32 %v762, 0.05243302
    %v764 = vmul.f32 %v757, %v763
    %v765 = vadd.f32 %v764, 0.18741608
    %v766 = vmul.f32 %v757, %v765
    %v767 = vadd.f32 %v766, 1.1283791
    %v768 = vmul.f32 %v662, %v767
    %v769 = vmul.f32 %v757, 3.8918573e-05
    %v770 = vadd.f32 %v769, 0.001143296
    %v771 = vmul.f32 %v757, %v770
    %v772 = vadd.f32 %v771, 0.014752088
    %v773 = vmul.f32 %v757, %v772
    %v774 = vadd.f32 %v773, 0.112945676
    %v775 = vmul.f32 %v757, %v774
    %v776 = vadd.f32 %v775, 0.4994258
    %v777 = vmul.f32 %v757, %v776
    %v778 = vadd.f32 %v777, 1.0
    %v779 = vrcp.pop %v778
    %v780 = vmul.f32 %v778, %v779
    %v781 = vsub.f32 1.0, %v780
    %v782 = vmul.f32 %v779, %v781
    %v783 = vadd.f32 %v779, %v782
    %vm784 = vweird.f32 %v778
    %vm785 = vweird.f32 %v779
    %vm786 = vmor %vm784, %vm785
    %v787 = vsel %vm786, %v779, %v783
    %v788 = vand.u32 2147483647, %v778
    %vm789 = vcmp.eq.f32.partialorder %v788, 8.507059e+37
    %v790 = vand.u32 %v778, 2147483648
    %v791 = vor.u32 1.1754944e-38, %v790
    %v792 = vsel %vm789, %v791, %v787
    %v793 = vmul.f32 %v768, %v792
    %v794 = vmin.f32 %v793, 1.0
    %v795 = vmax.f32 %v794, -1.0
    %v796 = vmul.f32 %v663, %v663
    %v797 = vmin.f32 16.0, %v796
    %v798 = vmul.f32 %v797, 2.1237322e-06
    %v799 = vadd.f32 %v798, 0.00028619796
    %v800 = vmul.f32 %v797, %v799
    %v801 = vadd.f32 %v800, 0.0036580483
    %v802 = vmul.f32 %v797, %v801
    %v803 = vadd.f32 %v802, 0.05243302
    %v804 = vmul.f32 %v797, %v803
    %v805 = vadd.f32 %v804, 0.18741608
    %v806 = vmul.f32 %v797, %v805
    %v807 = vadd.f32 %v806, 1.1283791
    %v808 = vmul.f32 %v663, %v807
    %v809 = vmul.f32 %v797, 3.8918573e-05
    %v810 = vadd.f32 %v809, 0.001143296
    %v811 = vmul.f32 %v797, %v810
    %v812 = vadd.f32 %v811, 0.014752088
    %v813 = vmul.f32 %v797, %v812
    %v814 = vadd.f32 %v813, 0.112945676
    %v815 = vmul.f32 %v797, %v814
    %v816 = vadd.f32 %v815, 0.4994258
    %v817 = vmul.f32 %v797, %v816
    %v818 = vadd.f32 %v817, 1.0
    %v819 = vrcp.pop %v818
    %v820 = vmul.f32 %v818, %v819
    %v821 = vsub.f32 1.0, %v820
    %v822 = vmul.f32 %v819, %v821
    %v823 = vadd.f32 %v819, %v822
    %vm824 = vweird.f32 %v818
    %vm825 = vweird.f32 %v819
    %vm826 = vmor %vm824, %vm825
    %v827 = vsel %vm826, %v819, %v823
    %v828 = vand.u32 2147483647, %v818
    %vm829 = vcmp.eq.f32.partialorder %v828, 8.507059e+37
    %v830 = vand.u32 %v818, 2147483648
    %v831 = vor.u32 1.1754944e-38, %v830
    %v832 = vsel %vm829, %v831, %v827
    %v833 = vmul.f32 %v808, %v832
    %v834 = vmin.f32 %v833, 1.0
    %v835 = vmax.f32 %v834, -1.0
    %v836 = vmul.f32 %v664, %v664
    %v837 = vmin.f32 16.0, %v836
    %v838 = vmul.f32 %v837, 2.1237322e-06
    %v839 = vadd.f32 %v838, 0.00028619796
    %v840 = vmul.f32 %v837, %v839
    %v841 = vadd.f32 %v840, 0.0036580483
    %v842 = vmul.f32 %v837, %v841
    %v843 = vadd.f32 %v842, 0.05243302
    %v844 = vmul.f32 %v837, %v843
    %v845 = vadd.f32 %v844, 0.18741608
    %v846 = vmul.f32 %v837, %v845
    %v847 = vadd.f32 %v846, 1.1283791
    %v848 = vmul.f32 %v664, %v847
    %v849 = vmul.f32 %v837, 3.8918573e-05
    %v850 = vadd.f32 %v849, 0.001143296
    %v851 = vmul.f32 %v837, %v850
    %v852 = vadd.f32 %v851, 0.014752088
    %v853 = vmul.f32 %v837, %v852
    %v854 = vadd.f32 %v853, 0.112945676
    %v855 = vmul.f32 %v837, %v854
    %v856 = vadd.f32 %v855, 0.4994258
    %v857 = vmul.f32 %v837, %v856
    %v858 = vadd.f32 %v857, 1.0
    %v859 = vrcp.pop %v858
    %v860 = vmul.f32 %v858, %v859
    %v861 = vsub.f32 1.0, %v860
    %v862 = vmul.f32 %v859, %v861
    %v863 = vadd.f32 %v859, %v862
    %vm864 = vweird.f32 %v858
    %vm865 = vweird.f32 %v859
    %vm866 = vmor %vm864, %vm865
    %v867 = vsel %vm866, %v859, %v863
    %v868 = vand.u32 2147483647, %v858
    %vm869 = vcmp.eq.f32.partialorder %v868, 8.507059e+37
    %v870 = vand.u32 %v858, 2147483648
    %v871 = vor.u32 1.1754944e-38, %v870
    %v872 = vsel %vm869, %v871, %v867
    %v873 = vmul.f32 %v848, %v872
    %v874 = vmin.f32 %v873, 1.0
    %v875 = vmax.f32 %v874, -1.0
    %v876 = vmul.f32 %v665, %v665
    %v877 = vmin.f32 16.0, %v876
    %v878 = vmul.f32 %v877, 2.1237322e-06
    %v879 = vadd.f32 %v878, 0.00028619796
    %v880 = vmul.f32 %v877, %v879
    %v881 = vadd.f32 %v880, 0.0036580483
    %v882 = vmul.f32 %v877, %v881
    %v883 = vadd.f32 %v882, 0.05243302
    %v884 = vmul.f32 %v877, %v883
    %v885 = vadd.f32 %v884, 0.18741608
    %v886 = vmul.f32 %v877, %v885
    %v887 = vadd.f32 %v886, 1.1283791
    %v888 = vmul.f32 %v665, %v887
    %v889 = vmul.f32 %v877, 3.8918573e-05
    %v890 = vadd.f32 %v889, 0.001143296
    %v891 = vmul.f32 %v877, %v890
    %v892 = vadd.f32 %v891, 0.014752088
    %v893 = vmul.f32 %v877, %v892
    %v894 = vadd.f32 %v893, 0.112945676
    %v895 = vmul.f32 %v877, %v894
    %v896 = vadd.f32 %v895, 0.4994258
    %v897 = vmul.f32 %v877, %v896
    %v898 = vadd.f32 %v897, 1.0
    %v899 = vrcp.pop %v898
    %v900 = vmul.f32 %v898, %v899
    %v901 = vsub.f32 1.0, %v900
    %v902 = vmul.f32 %v899, %v901
    %v903 = vadd.f32 %v899, %v902
    %vm904 = vweird.f32 %v898
    %vm905 = vweird.f32 %v899
    %vm906 = vmor %vm904, %vm905
    %v907 = vsel %vm906, %v899, %v903
    %v908 = vand.u32 2147483647, %v898
    %vm909 = vcmp.eq.f32.partialorder %v908, 8.507059e+37
    %v910 = vand.u32 %v898, 2147483648
    %v911 = vor.u32 1.1754944e-38, %v910
    %v912 = vsel %vm909, %v911, %v907
    %v913 = vmul.f32 %v888, %v912
    %v914 = vmin.f32 %v913, 1.0
    %v915 = vmax.f32 %v914, -1.0
    %v916 = vmul.f32 %v666, %v666
    %v917 = vmin.f32 16.0, %v916
    %v918 = vmul.f32 %v917, 2.1237322e-06
    %v919 = vadd.f32 %v918, 0.00028619796
    %v920 = vmul.f32 %v917, %v919
    %v921 = vadd.f32 %v920, 0.0036580483
    %v922 = vmul.f32 %v917, %v921
    %v923 = vadd.f32 %v922, 0.05243302
    %v924 = vmul.f32 %v917, %v923
    %v925 = vadd.f32 %v924, 0.18741608
    %v926 = vmul.f32 %v917, %v925
    %v927 = vadd.f32 %v926, 1.1283791
    %v928 = vmul.f32 %v666, %v927
    %v929 = vmul.f32 %v917, 3.8918573e-05
    %v930 = vadd.f32 %v929, 0.001143296
    %v931 = vmul.f32 %v917, %v930
    %v932 = vadd.f32 %v931, 0.014752088
    %v933 = vmul.f32 %v917, %v932
    %v934 = vadd.f32 %v933, 0.112945676
    %v935 = vmul.f32 %v917, %v934
    %v936 = vadd.f32 %v935, 0.4994258
    %v937 = vmul.f32 %v917, %v936
    %v938 = vadd.f32 %v937, 1.0
    %v939 = vrcp.pop %v938
    %v940 = vmul.f32 %v938, %v939
    %v941 = vsub.f32 1.0, %v940
    %v942 = vmul.f32 %v939, %v941
    %v943 = vadd.f32 %v939, %v942
    %vm944 = vweird.f32 %v938
    %vm945 = vweird.f32 %v939
    %vm946 = vmor %vm944, %vm945
    %v947 = vsel %vm946, %v939, %v943
    %v948 = vand.u32 2147483647, %v938
    %vm949 = vcmp.eq.f32.partialorder %v948, 8.507059e+37
    %v950 = vand.u32 %v938, 2147483648
    %v951 = vor.u32 1.1754944e-38, %v950
    %v952 = vsel %vm949, %v951, %v947
    %v953 = vmul.f32 %v928, %v952
    %v954 = vmin.f32 %v953, 1.0
    %v955 = vmax.f32 %v954, -1.0
    %v956 = vmul.f32 %v667, %v667
    %v957 = vmin.f32 16.0, %v956
    %v958 = vmul.f32 %v957, 2.1237322e-06
    %v959 = vadd.f32 %v958, 0.00028619796
    %v960 = vmul.f32 %v957, %v959
    %v961 = vadd.f32 %v960, 0.0036580483
    %v962 = vmul.f32 %v957, %v961
    %v963 = vadd.f32 %v962, 0.05243302
    %v964 = vmul.f32 %v957, %v963
    %v965 = vadd.f32 %v964, 0.18741608
    %v966 = vmul.f32 %v957, %v965
    %v967 = vadd.f32 %v966, 1.1283791
    %v968 = vmul.f32 %v667, %v967
    %v969 = vmul.f32 %v957, 3.8918573e-05
    %v970 = vadd.f32 %v969, 0.001143296
    %v971 = vmul.f32 %v957, %v970
    %v972 = vadd.f32 %v971, 0.014752088
    %v973 = vmul.f32 %v957, %v972
    %v974 = vadd.f32 %v973, 0.112945676
    %v975 = vmul.f32 %v957, %v974
    %v976 = vadd.f32 %v975, 0.4994258
    %v977 = vmul.f32 %v957, %v976
    %v978 = vadd.f32 %v977, 1.0
    %v979 = vrcp.pop %v978
    %v980 = vmul.f32 %v978, %v979
    %v981 = vsub.f32 1.0, %v980
    %v982 = vmul.f32 %v979, %v981
    %v983 = vadd.f32 %v979, %v982
    %vm984 = vweird.f32 %v978
    %vm985 = vweird.f32 %v979
    %vm986 = vmor %vm984, %vm985
    %v987 = vsel %vm986, %v979, %v983
    %v988 = vand.u32 2147483647, %v978
    %vm989 = vcmp.eq.f32.partialorder %v988, 8.507059e+37
    %v990 = vand.u32 %v978, 2147483648
    %v991 = vor.u32 1.1754944e-38, %v990
    %v992 = vsel %vm989, %v991, %v987
    %v993 = vmul.f32 %v968, %v992
    %v994 = vmin.f32 %v993, 1.0
    %v995 = vmax.f32 %v994, -1.0
    %v996 = vmul.f32 %v668, %v668
    %v997 = vmin.f32 16.0, %v996
    %v998 = vmul.f32 %v997, 2.1237322e-06
    %v999 = vadd.f32 %v998, 0.00028619796
    %v1000 = vmul.f32 %v997, %v999
    %v1001 = vadd.f32 %v1000, 0.0036580483
    %v1002 = vmul.f32 %v997, %v1001
    %v1003 = vadd.f32 %v1002, 0.05243302
    %v1004 = vmul.f32 %v997, %v1003
    %v1005 = vadd.f32 %v1004, 0.18741608
    %v1006 = vmul.f32 %v997, %v1005
    %v1007 = vadd.f32 %v1006, 1.1283791
    %v1008 = vmul.f32 %v668, %v1007
    %v1009 = vmul.f32 %v997, 3.8918573e-05
    %v1010 = vadd.f32 %v1009, 0.001143296
    %v1011 = vmul.f32 %v997, %v1010
    %v1012 = vadd.f32 %v1011, 0.014752088
    %v1013 = vmul.f32 %v997, %v1012
    %v1014 = vadd.f32 %v1013, 0.112945676
    %v1015 = vmul.f32 %v997, %v1014
    %v1016 = vadd.f32 %v1015, 0.4994258
    %v1017 = vmul.f32 %v997, %v1016
    %v1018 = vadd.f32 %v1017, 1.0
    %v1019 = vrcp.pop %v1018
    %v1020 = vmul.f32 %v1018, %v1019
    %v1021 = vsub.f32 1.0, %v1020
    %v1022 = vmul.f32 %v1019, %v1021
    %v1023 = vadd.f32 %v1019, %v1022
    %vm1024 = vweird.f32 %v1018
    %vm1025 = vweird.f32 %v1019
    %vm1026 = vmor %vm1024, %vm1025
    %v1027 = vsel %vm1026, %v1019, %v1023
    %v1028 = vand.u32 2147483647, %v1018
    %vm1029 = vcmp.eq.f32.partialorder %v1028, 8.507059e+37
    %v1030 = vand.u32 %v1018, 2147483648
    %v1031 = vor.u32 1.1754944e-38, %v1030
    %v1032 = vsel %vm1029, %v1031, %v1027
    %v1033 = vmul.f32 %v1008, %v1032
    %v1034 = vmin.f32 %v1033, 1.0
    %v1035 = vmax.f32 %v1034, -1.0
    %v1036 = vmul.f32 %v669, %v669
    %v1037 = vmin.f32 16.0, %v1036
    %v1038 = vmul.f32 %v1037, 2.1237322e-06
    %v1039 = vadd.f32 %v1038, 0.00028619796
    %v1040 = vmul.f32 %v1037, %v1039
    %v1041 = vadd.f32 %v1040, 0.0036580483
    %v1042 = vmul.f32 %v1037, %v1041
    %v1043 = vadd.f32 %v1042, 0.05243302
    %v1044 = vmul.f32 %v1037, %v1043
    %v1045 = vadd.f32 %v1044, 0.18741608
    %v1046 = vmul.f32 %v1037, %v1045
    %v1047 = vadd.f32 %v1046, 1.1283791
    %v1048 = vmul.f32 %v669, %v1047
    %v1049 = vmul.f32 %v1037, 3.8918573e-05
    %v1050 = vadd.f32 %v1049, 0.001143296
    %v1051 = vmul.f32 %v1037, %v1050
    %v1052 = vadd.f32 %v1051, 0.014752088
    %v1053 = vmul.f32 %v1037, %v1052
    %v1054 = vadd.f32 %v1053, 0.112945676
    %v1055 = vmul.f32 %v1037, %v1054
    %v1056 = vadd.f32 %v1055, 0.4994258
    %v1057 = vmul.f32 %v1037, %v1056
    %v1058 = vadd.f32 %v1057, 1.0
    %v1059 = vrcp.pop %v1058
    %v1060 = vmul.f32 %v1058, %v1059
    %v1061 = vsub.f32 1.0, %v1060
    %v1062 = vmul.f32 %v1059, %v1061
    %v1063 = vadd.f32 %v1059, %v1062
    %vm1064 = vweird.f32 %v1058
    %vm1065 = vweird.f32 %v1059
    %vm1066 = vmor %vm1064, %vm1065
    %v1067 = vsel %vm1066, %v1059, %v1063
    %v1068 = vand.u32 2147483647, %v1058
    %vm1069 = vcmp.eq.f32.partialorder %v1068, 8.507059e+37
    %v1070 = vand.u32 %v1058, 2147483648
    %v1071 = vor.u32 1.1754944e-38, %v1070
    %v1072 = vsel %vm1069, %v1071, %v1067
    %v1073 = vmul.f32 %v1048, %v1072
    %v1074 = vmin.f32 %v1073, 1.0
    %v1075 = vmax.f32 %v1074, -1.0
    %v1076 = vmul.f32 %v670, %v670
    %v1077 = vmin.f32 16.0, %v1076
    %v1078 = vmul.f32 %v1077, 2.1237322e-06
    %v1079 = vadd.f32 %v1078, 0.00028619796
    %v1080 = vmul.f32 %v1077, %v1079
    %v1081 = vadd.f32 %v1080, 0.0036580483
    %v1082 = vmul.f32 %v1077, %v1081
    %v1083 = vadd.f32 %v1082, 0.05243302
    %v1084 = vmul.f32 %v1077, %v1083
    %v1085 = vadd.f32 %v1084, 0.18741608
    %v1086 = vmul.f32 %v1077, %v1085
    %v1087 = vadd.f32 %v1086, 1.1283791
    %v1088 = vmul.f32 %v670, %v1087
    %v1089 = vmul.f32 %v1077, 3.8918573e-05
    %v1090 = vadd.f32 %v1089, 0.001143296
    %v1091 = vmul.f32 %v1077, %v1090
    %v1092 = vadd.f32 %v1091, 0.014752088
    %v1093 = vmul.f32 %v1077, %v1092
    %v1094 = vadd.f32 %v1093, 0.112945676
    %v1095 = vmul.f32 %v1077, %v1094
    %v1096 = vadd.f32 %v1095, 0.4994258
    %v1097 = vmul.f32 %v1077, %v1096
    %v1098 = vadd.f32 %v1097, 1.0
    %v1099 = vrcp.pop %v1098
    %v1100 = vmul.f32 %v1098, %v1099
    %v1101 = vsub.f32 1.0, %v1100
    %v1102 = vmul.f32 %v1099, %v1101
    %v1103 = vadd.f32 %v1099, %v1102
    %vm1104 = vweird.f32 %v1098
    %vm1105 = vweird.f32 %v1099
    %vm1106 = vmor %vm1104, %vm1105
    %v1107 = vsel %vm1106, %v1099, %v1103
    %v1108 = vand.u32 2147483647, %v1098
    %vm1109 = vcmp.eq.f32.partialorder %v1108, 8.507059e+37
    %v1110 = vand.u32 %v1098, 2147483648
    %v1111 = vor.u32 1.1754944e-38, %v1110
    %v1112 = vsel %vm1109, %v1111, %v1107
    %v1113 = vmul.f32 %v1088, %v1112
    %v1114 = vmin.f32 %v1113, 1.0
    %v1115 = vmax.f32 %v1114, -1.0
    %v1116 = vmul.f32 %v671, %v671
    %v1117 = vmin.f32 16.0, %v1116
    %v1118 = vmul.f32 %v1117, 2.1237322e-06
    %v1119 = vadd.f32 %v1118, 0.00028619796
    %v1120 = vmul.f32 %v1117, %v1119
    %v1121 = vadd.f32 %v1120, 0.0036580483
    %v1122 = vmul.f32 %v1117, %v1121
    %v1123 = vadd.f32 %v1122, 0.05243302
    %v1124 = vmul.f32 %v1117, %v1123
    %v1125 = vadd.f32 %v1124, 0.18741608
    %v1126 = vmul.f32 %v1117, %v1125
    %v1127 = vadd.f32 %v1126, 1.1283791
    %v1128 = vmul.f32 %v671, %v1127
    %v1129 = vmul.f32 %v1117, 3.8918573e-05
    %v1130 = vadd.f32 %v1129, 0.001143296
    %v1131 = vmul.f32 %v1117, %v1130
    %v1132 = vadd.f32 %v1131, 0.014752088
    %v1133 = vmul.f32 %v1117, %v1132
    %v1134 = vadd.f32 %v1133, 0.112945676
    %v1135 = vmul.f32 %v1117, %v1134
    %v1136 = vadd.f32 %v1135, 0.4994258
    %v1137 = vmul.f32 %v1117, %v1136
    %v1138 = vadd.f32 %v1137, 1.0
    %v1139 = vrcp.pop %v1138
    %v1140 = vmul.f32 %v1138, %v1139
    %v1141 = vsub.f32 1.0, %v1140
    %v1142 = vmul.f32 %v1139, %v1141
    %v1143 = vadd.f32 %v1139, %v1142
    %vm1144 = vweird.f32 %v1138
    %vm1145 = vweird.f32 %v1139
    %vm1146 = vmor %vm1144, %vm1145
    %v1147 = vsel %vm1146, %v1139, %v1143
    %v1148 = vand.u32 2147483647, %v1138
    %vm1149 = vcmp.eq.f32.partialorder %v1148, 8.507059e+37
    %v1150 = vand.u32 %v1138, 2147483648
    %v1151 = vor.u32 1.1754944e-38, %v1150
    %v1152 = vsel %vm1149, %v1151, %v1147
    %v1153 = vmul.f32 %v1128, %v1152
    %v1154 = vmin.f32 %v1153, 1.0
    %v1155 = vmax.f32 %v1154, -1.0
    %v1156 = vmul.f32 %v672, %v672
    %v1157 = vmin.f32 16.0, %v1156
    %v1158 = vmul.f32 %v1157, 2.1237322e-06
    %v1159 = vadd.f32 %v1158, 0.00028619796
    %v1160 = vmul.f32 %v1157, %v1159
    %v1161 = vadd.f32 %v1160, 0.0036580483
    %v1162 = vmul.f32 %v1157, %v1161
    %v1163 = vadd.f32 %v1162, 0.05243302
    %v1164 = vmul.f32 %v1157, %v1163
    %v1165 = vadd.f32 %v1164, 0.18741608
    %v1166 = vmul.f32 %v1157, %v1165
    %v1167 = vadd.f32 %v1166, 1.1283791
    %v1168 = vmul.f32 %v672, %v1167
    %v1169 = vmul.f32 %v1157, 3.8918573e-05
    %v1170 = vadd.f32 %v1169, 0.001143296
    %v1171 = vmul.f32 %v1157, %v1170
    %v1172 = vadd.f32 %v1171, 0.014752088
    %v1173 = vmul.f32 %v1157, %v1172
    %v1174 = vadd.f32 %v1173, 0.112945676
    %v1175 = vmul.f32 %v1157, %v1174
    %v1176 = vadd.f32 %v1175, 0.4994258
    %v1177 = vmul.f32 %v1157, %v1176
    %v1178 = vadd.f32 %v1177, 1.0
    %v1179 = vrcp.pop %v1178
    %v1180 = vmul.f32 %v1178, %v1179
    %v1181 = vsub.f32 1.0, %v1180
    %v1182 = vmul.f32 %v1179, %v1181
    %v1183 = vadd.f32 %v1179, %v1182
    %vm1184 = vweird.f32 %v1178
    %vm1185 = vweird.f32 %v1179
    %vm1186 = vmor %vm1184, %vm1185
    %v1187 = vsel %vm1186, %v1179, %v1183
    %v1188 = vand.u32 2147483647, %v1178
    %vm1189 = vcmp.eq.f32.partialorder %v1188, 8.507059e+37
    %v1190 = vand.u32 %v1178, 2147483648
    %v1191 = vor.u32 1.1754944e-38, %v1190
    %v1192 = vsel %vm1189, %v1191, %v1187
    %v1193 = vmul.f32 %v1168, %v1192
    %v1194 = vmin.f32 %v1193, 1.0
    %v1195 = vmax.f32 %v1194, -1.0
    %v1196 = vmul.f32 %v673, %v673
    %v1197 = vmin.f32 16.0, %v1196
    %v1198 = vmul.f32 %v1197, 2.1237322e-06
    %v1199 = vadd.f32 %v1198, 0.00028619796
    %v1200 = vmul.f32 %v1197, %v1199
    %v1201 = vadd.f32 %v1200, 0.0036580483
    %v1202 = vmul.f32 %v1197, %v1201
    %v1203 = vadd.f32 %v1202, 0.05243302
    %v1204 = vmul.f32 %v1197, %v1203
    %v1205 = vadd.f32 %v1204, 0.18741608
    %v1206 = vmul.f32 %v1197, %v1205
    %v1207 = vadd.f32 %v1206, 1.1283791
    %v1208 = vmul.f32 %v673, %v1207
    %v1209 = vmul.f32 %v1197, 3.8918573e-05
    %v1210 = vadd.f32 %v1209, 0.001143296
    %v1211 = vmul.f32 %v1197, %v1210
    %v1212 = vadd.f32 %v1211, 0.014752088
    %v1213 = vmul.f32 %v1197, %v1212
    %v1214 = vadd.f32 %v1213, 0.112945676
    %v1215 = vmul.f32 %v1197, %v1214
    %v1216 = vadd.f32 %v1215, 0.4994258
    %v1217 = vmul.f32 %v1197, %v1216
    %v1218 = vadd.f32 %v1217, 1.0
    %v1219 = vrcp.pop %v1218
    %v1220 = vmul.f32 %v1218, %v1219
    %v1221 = vsub.f32 1.0, %v1220
    %v1222 = vmul.f32 %v1219, %v1221
    %v1223 = vadd.f32 %v1219, %v1222
    %vm1224 = vweird.f32 %v1218
    %vm1225 = vweird.f32 %v1219
    %vm1226 = vmor %vm1224, %vm1225
    %v1227 = vsel %vm1226, %v1219, %v1223
    %v1228 = vand.u32 2147483647, %v1218
    %vm1229 = vcmp.eq.f32.partialorder %v1228, 8.507059e+37
    %v1230 = vand.u32 %v1218, 2147483648
    %v1231 = vor.u32 1.1754944e-38, %v1230
    %v1232 = vsel %vm1229, %v1231, %v1227
    %v1233 = vmul.f32 %v1208, %v1232
    %v1234 = vmin.f32 %v1233, 1.0
    %v1235 = vmax.f32 %v1234, -1.0
    %v1236 = vmul.f32 %v674, %v674
    %v1237 = vmin.f32 16.0, %v1236
    %v1238 = vmul.f32 %v1237, 2.1237322e-06
    %v1239 = vadd.f32 %v1238, 0.00028619796
    %v1240 = vmul.f32 %v1237, %v1239
    %v1241 = vadd.f32 %v1240, 0.0036580483
    %v1242 = vmul.f32 %v1237, %v1241
    %v1243 = vadd.f32 %v1242, 0.05243302
    %v1244 = vmul.f32 %v1237, %v1243
    %v1245 = vadd.f32 %v1244, 0.18741608
    %v1246 = vmul.f32 %v1237, %v1245
    %v1247 = vadd.f32 %v1246, 1.1283791
    %v1248 = vmul.f32 %v674, %v1247
    %v1249 = vmul.f32 %v1237, 3.8918573e-05
    %v1250 = vadd.f32 %v1249, 0.001143296
    %v1251 = vmul.f32 %v1237, %v1250
    %v1252 = vadd.f32 %v1251, 0.014752088
    %v1253 = vmul.f32 %v1237, %v1252
    %v1254 = vadd.f32 %v1253, 0.112945676
    %v1255 = vmul.f32 %v1237, %v1254
    %v1256 = vadd.f32 %v1255, 0.4994258
    %v1257 = vmul.f32 %v1237, %v1256
    %v1258 = vadd.f32 %v1257, 1.0
    %v1259 = vrcp.pop %v1258
    %v1260 = vmul.f32 %v1258, %v1259
    %v1261 = vsub.f32 1.0, %v1260
    %v1262 = vmul.f32 %v1259, %v1261
    %v1263 = vadd.f32 %v1259, %v1262
    %vm1264 = vweird.f32 %v1258
    %vm1265 = vweird.f32 %v1259
    %vm1266 = vmor %vm1264, %vm1265
    %v1267 = vsel %vm1266, %v1259, %v1263
    %v1268 = vand.u32 2147483647, %v1258
    %vm1269 = vcmp.eq.f32.partialorder %v1268, 8.507059e+37
    %v1270 = vand.u32 %v1258, 2147483648
    %v1271 = vor.u32 1.1754944e-38, %v1270
    %v1272 = vsel %vm1269, %v1271, %v1267
    %v1273 = vmul.f32 %v1248, %v1272
    %v1274 = vmin.f32 %v1273, 1.0
    %v1275 = vmax.f32 %v1274, -1.0
    %v1276 = vmul.f32 %v675, %v675
    %v1277 = vmin.f32 16.0, %v1276
    %v1278 = vmul.f32 %v1277, 2.1237322e-06
    %v1279 = vadd.f32 %v1278, 0.00028619796
    %v1280 = vmul.f32 %v1277, %v1279
    %v1281 = vadd.f32 %v1280, 0.0036580483
    %v1282 = vmul.f32 %v1277, %v1281
    %v1283 = vadd.f32 %v1282, 0.05243302
    %v1284 = vmul.f32 %v1277, %v1283
    %v1285 = vadd.f32 %v1284, 0.18741608
    %v1286 = vmul.f32 %v1277, %v1285
    %v1287 = vadd.f32 %v1286, 1.1283791
    %v1288 = vmul.f32 %v675, %v1287
    %v1289 = vmul.f32 %v1277, 3.8918573e-05
    %v1290 = vadd.f32 %v1289, 0.001143296
    %v1291 = vmul.f32 %v1277, %v1290
    %v1292 = vadd.f32 %v1291, 0.014752088
    %v1293 = vmul.f32 %v1277, %v1292
    %v1294 = vadd.f32 %v1293, 0.112945676
    %v1295 = vmul.f32 %v1277, %v1294
    %v1296 = vadd.f32 %v1295, 0.4994258
    %v1297 = vmul.f32 %v1277, %v1296
    %v1298 = vadd.f32 %v1297, 1.0
    %v1299 = vrcp.pop %v1298
    %v1300 = vmul.f32 %v1298, %v1299
    %v1301 = vsub.f32 1.0, %v1300
    %v1302 = vmul.f32 %v1299, %v1301
    %v1303 = vadd.f32 %v1299, %v1302
    %vm1304 = vweird.f32 %v1298
    %vm1305 = vweird.f32 %v1299
    %vm1306 = vmor %vm1304, %vm1305
    %v1307 = vsel %vm1306, %v1299, %v1303
    %v1308 = vand.u32 2147483647, %v1298
    %vm1309 = vcmp.eq.f32.partialorder %v1308, 8.507059e+37
    %v1310 = vand.u32 %v1298, 2147483648
    %v1311 = vor.u32 1.1754944e-38, %v1310
    %v1312 = vsel %vm1309, %v1311, %v1307
    %v1313 = vmul.f32 %v1288, %v1312
    %v1314 = vmin.f32 %v1313, 1.0
    %v1315 = vmax.f32 %v1314, -1.0
    %v1316 = vadd.f32 %v715, 1.0
    %v1317 = vadd.f32 %v755, 1.0
    %v1318 = vadd.f32 %v795, 1.0
    %v1319 = vadd.f32 %v835, 1.0
    %v1320 = vadd.f32 %v875, 1.0
    %v1321 = vadd.f32 %v915, 1.0
    %v1322 = vadd.f32 %v955, 1.0
    %v1323 = vadd.f32 %v995, 1.0
    %v1324 = vadd.f32 %v1035, 1.0
    %v1325 = vadd.f32 %v1075, 1.0
    %v1326 = vadd.f32 %v1115, 1.0
    %v1327 = vadd.f32 %v1155, 1.0
    %v1328 = vadd.f32 %v1195, 1.0
    %v1329 = vadd.f32 %v1235, 1.0
    %v1330 = vadd.f32 %v1275, 1.0
    %v1331 = vadd.f32 %v1315, 1.0
    %v1332 = vmul.f32 %v644, %v1316
    %v1333 = vmul.f32 %v645, %v1317
    %v1334 = vmul.f32 %v646, %v1318
    %v1335 = vmul.f32 %v647, %v1319
    %v1336 = vmul.f32 %v648, %v1320
    %v1337 = vmul.f32 %v649, %v1321
    %v1338 = vmul.f32 %v650, %v1322
    %v1339 = vmul.f32 %v651, %v1323
    %v1340 = vmul.f32 %v652, %v1324
    %v1341 = vmul.f32 %v653, %v1325
    %v1342 = vmul.f32 %v654, %v1326
    %v1343 = vmul.f32 %v655, %v1327
    %v1344 = vmul.f32 %v656, %v1328
    %v1345 = vmul.f32 %v657, %v1329
    %v1346 = vmul.f32 %v658, %v1330
    %v1347 = vmul.f32 %v659, %v1331
    %v1348 = vmul.f32 %v556, %v1332
    %v1349 = vmul.f32 %v558, %v1333
    %v1350 = vmul.f32 %v561, %v1334
    %v1351 = vmul.f32 %v563, %v1335
    %v1352 = vmul.f32 %v566, %v1336
    %v1353 = vmul.f32 %v568, %v1337
    %v1354 = vmul.f32 %v571, %v1338
    %v1355 = vmul.f32 %v573, %v1339
    %v1356 = vmul.f32 %v576, %v1340
    %v1357 = vmul.f32 %v578, %v1341
    %v1358 = vmul.f32 %v581, %v1342
    %v1359 = vmul.f32 %v583, %v1343
    %v1360 = vmul.f32 %v586, %v1344
    %v1361 = vmul.f32 %v588, %v1345
    %v1362 = vmul.f32 %v591, %v1346
    %v1363 = vmul.f32 %v593, %v1347
    %v1364 = vpack.c.bf16 %v1349, %v1348
    %v1365 = vpack.c.bf16 %v1351, %v1350
    %v1366 = vpack.c.bf16 %v1353, %v1352
    %v1367 = vpack.c.bf16 %v1355, %v1354
    %v1368 = vpack.c.bf16 %v1357, %v1356
    %v1369 = vpack.c.bf16 %v1359, %v1358
    %v1370 = vpack.c.bf16 %v1361, %v1360
    %v1371 = vpack.c.bf16 %v1363, %v1362
    %v1372 = vld [vmem:[#allocation3] sm:$0xff]
    %v1373 = vld [vmem:[#allocation3 + $0x8] sm:$0xff]
    %v1374 = vld [vmem:[#allocation3 + $0x10] sm:$0xff]
    %v1375 = vld [vmem:[#allocation3 + $0x18] sm:$0xff]
    %v1376 = vld [vmem:[#allocation3 + $0x20] sm:$0xff]
    %v1377 = vld [vmem:[#allocation3 + $0x28] sm:$0xff]
    %v1378 = vld [vmem:[#allocation3 + $0x30] sm:$0xff]
    %v1379 = vld [vmem:[#allocation3 + $0x38] sm:$0xff]
    %v1380 = vld [vmem:[#allocation3 + $0x40] sm:$0xff]
    %v1381 = vld [vmem:[#allocation3 + $0x48] sm:$0xff]
    %v1382 = vld [vmem:[#allocation3 + $0x50] sm:$0xff]
    %v1383 = vld [vmem:[#allocation3 + $0x58] sm:$0xff]
    %v1384 = vld [vmem:[#allocation3 + $0x60] sm:$0xff]
    %v1385 = vld [vmem:[#allocation3 + $0x68] sm:$0xff]
    %v1386 = vld [vmem:[#allocation3 + $0x70] sm:$0xff]
    %v1387 = vld [vmem:[#allocation3 + $0x78] sm:$0xff]
    %v1388 = vld [vmem:[#allocation9] sm:$0xf]
    %v1389 = vld [vmem:[#allocation9 + $0x4] sm:$0xf]
    %v1390 = vld [vmem:[#allocation9 + $0x8] sm:$0xf]
    %v1391 = vld [vmem:[#allocation9 + $0xc] sm:$0xf]
    %v1392 = vld [vmem:[#allocation9 + $0x10] sm:$0xf]
    %v1393 = vld [vmem:[#allocation9 + $0x14] sm:$0xf]
    %v1394 = vld [vmem:[#allocation9 + $0x18] sm:$0xf]
    %v1395 = vld [vmem:[#allocation9 + $0x1c] sm:$0xf]
    %v1396 = vld [vmem:[#allocation9 + $0x20] sm:$0xf]
    %v1397 = vld [vmem:[#allocation9 + $0x24] sm:$0xf]
    %v1398 = vld [vmem:[#allocation9 + $0x28] sm:$0xf]
    %v1399 = vld [vmem:[#allocation9 + $0x2c] sm:$0xf]
    %v1400 = vld [vmem:[#allocation9 + $0x30] sm:$0xf]
    %v1401 = vld [vmem:[#allocation9 + $0x34] sm:$0xf]
    %v1402 = vld [vmem:[#allocation9 + $0x38] sm:$0xf]
    %v1403 = vld [vmem:[#allocation9 + $0x3c] sm:$0xf]
    %v1420 = vunpack.c.l.b16 %v1388
    %v1421 = vunpack.c.l.b16 %v1389
    %v1422 = vunpack.c.l.b16 %v1390
    %v1423 = vunpack.c.l.b16 %v1391
    %v1424 = vunpack.c.l.b16 %v1392
    %v1425 = vunpack.c.l.b16 %v1393
    %v1426 = vunpack.c.l.b16 %v1394
    %v1427 = vunpack.c.l.b16 %v1395
    %v1428 = vunpack.c.l.b16 %v1396
    %v1429 = vunpack.c.l.b16 %v1397
    %v1430 = vunpack.c.l.b16 %v1398
    %v1431 = vunpack.c.l.b16 %v1399
    %v1432 = vunpack.c.l.b16 %v1400
    %v1433 = vunpack.c.l.b16 %v1401
    %v1434 = vunpack.c.l.b16 %v1402
    %v1435 = vunpack.c.l.b16 %v1403
    %v1436 = vpack.c.b16 %v1421, %v1420
    %v1437 = vpack.c.b16 %v1423, %v1422
    %v1438 = vpack.c.b16 %v1425, %v1424
    %v1439 = vpack.c.b16 %v1427, %v1426
    %v1440 = vpack.c.b16 %v1429, %v1428
    %v1441 = vpack.c.b16 %v1431, %v1430
    %v1442 = vpack.c.b16 %v1433, %v1432
    %v1443 = vpack.c.b16 %v1435, %v1434
    %1452 = vmatpush.bf16.msra.mxu0 %v1443
    %1453 = vmatpush.bf16.msra.mxu0 %v1442
    %1454 = vmatpush.bf16.msra.mxu0 %v1441
    %1455 = vmatpush.bf16.msra.mxu0 %v1440
    %1456 = vmatpush.bf16.msra.mxu0 %v1439
    %1457 = vmatpush.bf16.msra.mxu0 %v1438
    %1458 = vmatpush.bf16.msra.mxu0 %v1437
    %1459 = vmatpush.bf16.msra.mxu0 %v1436
    %1460 = vmatmul.bf16.gmra.mxu0 %v1364
    %v1461 = vpop.f32.mrf.mxu0
    %v1462 = vadd.f32 0.0, %v1461
    %v1463 = vpop.f32.mrf.mxu0
    %v1464 = vadd.f32 0.0, %v1463
    %1465 = vmatmul.bf16.gmra.mxu0 %v1365
    %v1466 = vpop.f32.mrf.mxu0
    %v1467 = vadd.f32 0.0, %v1466
    %v1468 = vpop.f32.mrf.mxu0
    %v1469 = vadd.f32 0.0, %v1468
    %1470 = vmatmul.bf16.gmra.mxu0 %v1366
    %v1471 = vpop.f32.mrf.mxu0
    %v1472 = vadd.f32 0.0, %v1471
    %v1473 = vpop.f32.mrf.mxu0
    %v1474 = vadd.f32 0.0, %v1473
    %1475 = vmatmul.bf16.gmra.mxu0 %v1367
    %v1476 = vpop.f32.mrf.mxu0
    %v1477 = vadd.f32 0.0, %v1476
    %v1478 = vpop.f32.mrf.mxu0
    %v1479 = vadd.f32 0.0, %v1478
    %1480 = vmatmul.bf16.gmra.mxu0 %v1368
    %v1481 = vpop.f32.mrf.mxu0
    %v1482 = vadd.f32 0.0, %v1481
    %v1483 = vpop.f32.mrf.mxu0
    %v1484 = vadd.f32 0.0, %v1483
    %1485 = vmatmul.bf16.gmra.mxu0 %v1369
    %v1486 = vpop.f32.mrf.mxu0
    %v1487 = vadd.f32 0.0, %v1486
    %v1488 = vpop.f32.mrf.mxu0
    %v1489 = vadd.f32 0.0, %v1488
    %1490 = vmatmul.bf16.gmra.mxu0 %v1370
    %v1491 = vpop.f32.mrf.mxu0
    %v1492 = vadd.f32 0.0, %v1491
    %v1493 = vpop.f32.mrf.mxu0
    %v1494 = vadd.f32 0.0, %v1493
    %1495 = vmatmul.bf16.gmra.mxu0 %v1371
    %v1496 = vpop.f32.mrf.mxu0
    %v1497 = vadd.f32 0.0, %v1496
    %v1498 = vpop.f32.mrf.mxu0
    %v1499 = vadd.f32 0.0, %v1498
    %1500 = vdwg.mxu0
    %v1501 = vadd.f32 %v1372, %v1462
    %v1502 = vadd.f32 %v1373, %v1464
    %v1503 = vadd.f32 %v1374, %v1467
    %v1504 = vadd.f32 %v1375, %v1469
    %v1505 = vadd.f32 %v1376, %v1472
    %v1506 = vadd.f32 %v1377, %v1474
    %v1507 = vadd.f32 %v1378, %v1477
    %v1508 = vadd.f32 %v1379, %v1479
    %v1509 = vadd.f32 %v1380, %v1482
    %v1510 = vadd.f32 %v1381, %v1484
    %v1511 = vadd.f32 %v1382, %v1487
    %v1512 = vadd.f32 %v1383, %v1489
    %v1513 = vadd.f32 %v1384, %v1492
    %v1514 = vadd.f32 %v1385, %v1494
    %v1515 = vadd.f32 %v1386, %v1497
    %v1516 = vadd.f32 %v1387, %v1499
    %1517 = vst [vmem:[#allocation3] sm:$0xff] %v1501
    %1518 = vst [vmem:[#allocation3 + $0x8] sm:$0xff] %v1502
    %1519 = vst [vmem:[#allocation3 + $0x10] sm:$0xff] %v1503
    %1520 = vst [vmem:[#allocation3 + $0x18] sm:$0xff] %v1504
    %1521 = vst [vmem:[#allocation3 + $0x20] sm:$0xff] %v1505
    %1522 = vst [vmem:[#allocation3 + $0x28] sm:$0xff] %v1506
    %1523 = vst [vmem:[#allocation3 + $0x30] sm:$0xff] %v1507
    %1524 = vst [vmem:[#allocation3 + $0x38] sm:$0xff] %v1508
    %1525 = vst [vmem:[#allocation3 + $0x40] sm:$0xff] %v1509
    %1526 = vst [vmem:[#allocation3 + $0x48] sm:$0xff] %v1510
    %1527 = vst [vmem:[#allocation3 + $0x50] sm:$0xff] %v1511
    %1528 = vst [vmem:[#allocation3 + $0x58] sm:$0xff] %v1512
    %1529 = vst [vmem:[#allocation3 + $0x60] sm:$0xff] %v1513
    %1530 = vst [vmem:[#allocation3 + $0x68] sm:$0xff] %v1514
    %1531 = vst [vmem:[#allocation3 + $0x70] sm:$0xff] %v1515
    %1532 = vst [vmem:[#allocation3 + $0x78] sm:$0xff] %v1516
    // Predicated region
    $region30: #{tpu_custom_call.1} parent=1 // pred_check
      %p1533 = pneg %p62
    $region31: #{tpu_custom_call.1} parent=1 // pred_check_branch
      %1535 = sbr.rel (%p1533) target = $region33
    $region32: #{tpu_custom_call.1} parent=1 // pred_region
      %v1536 = vld [vmem:[#allocation3] sm:$0xff]
      %v1537 = vld [vmem:[#allocation3 + $0x8] sm:$0xff]
      %v1538 = vld [vmem:[#allocation3 + $0x10] sm:$0xff]
      %v1539 = vld [vmem:[#allocation3 + $0x18] sm:$0xff]
      %v1540 = vld [vmem:[#allocation3 + $0x20] sm:$0xff]
      %v1541 = vld [vmem:[#allocation3 + $0x28] sm:$0xff]
      %v1542 = vld [vmem:[#allocation3 + $0x30] sm:$0xff]
      %v1543 = vld [vmem:[#allocation3 + $0x38] sm:$0xff]
      %v1544 = vld [vmem:[#allocation3 + $0x40] sm:$0xff]
      %v1545 = vld [vmem:[#allocation3 + $0x48] sm:$0xff]
      %v1546 = vld [vmem:[#allocation3 + $0x50] sm:$0xff]
      %v1547 = vld [vmem:[#allocation3 + $0x58] sm:$0xff]
      %v1548 = vld [vmem:[#allocation3 + $0x60] sm:$0xff]
      %v1549 = vld [vmem:[#allocation3 + $0x68] sm:$0xff]
      %v1550 = vld [vmem:[#allocation3 + $0x70] sm:$0xff]
      %v1551 = vld [vmem:[#allocation3 + $0x78] sm:$0xff]
      %1552 = vst [vmem:[#allocation10] sm:$0xff] %v1536
      %1553 = vst [vmem:[#allocation10 + $0x8] sm:$0xff] %v1537
      %1554 = vst [vmem:[#allocation10 + $0x10] sm:$0xff] %v1538
      %1555 = vst [vmem:[#allocation10 + $0x18] sm:$0xff] %v1539
      %1556 = vst [vmem:[#allocation10 + $0x20] sm:$0xff] %v1540
      %1557 = vst [vmem:[#allocation10 + $0x28] sm:$0xff] %v1541
      %1558 = vst [vmem:[#allocation10 + $0x30] sm:$0xff] %v1542
      %1559 = vst [vmem:[#allocation10 + $0x38] sm:$0xff] %v1543
      %1560 = vst [vmem:[#allocation10 + $0x40] sm:$0xff] %v1544
      %1561 = vst [vmem:[#allocation10 + $0x48] sm:$0xff] %v1545
      %1562 = vst [vmem:[#allocation10 + $0x50] sm:$0xff] %v1546
      %1563 = vst [vmem:[#allocation10 + $0x58] sm:$0xff] %v1547
      %1564 = vst [vmem:[#allocation10 + $0x60] sm:$0xff] %v1548
      %1565 = vst [vmem:[#allocation10 + $0x68] sm:$0xff] %v1549
      %1566 = vst [vmem:[#allocation10 + $0x70] sm:$0xff] %v1550
      %1567 = vst [vmem:[#allocation10 + $0x78] sm:$0xff] %v1551
    $region33: #{tpu_custom_call.1} parent=1 // pred_fallthru
      _
    // Predicated region
    $region34: #{tpu_custom_call.1} parent=1 // pred_check
      _
    $region35: #{tpu_custom_call.1} parent=1 // pred_check_branch
      %1569 = sbr.rel (0) target = $region37
    $region36: #{tpu_custom_call.1} parent=1 // pred_region
      %1571 = vsyncadd [#allocation6], 0
      %s1572 = sshll.u32 [#allocation10], 4
      %s1573 = int_to_ptr.vmem [resolvable:$true] %s1572
      %s1574 = sshll.u32 %s3, 4
      %s1575 = int_to_ptr.hbm [resolvable:$true] %s1574
      %1580 = dma.vmem_to_hbm [thread:$0]  %s1573, 2048, %s1575, [#allocation6], 128, 128, 8
    $region37: #{tpu_custom_call.1} parent=1 // pred_fallthru
      _
    // Predicated region
    $region38: #{tpu_custom_call.1} parent=1 // pred_check
      _
    $region39: #{tpu_custom_call.1} parent=1 // pred_check_branch
      %1582 = sbr.rel (0) target = $region41
    $region40: #{tpu_custom_call.1} parent=1 // pred_region
      %1584 = dma.done [#allocation6], 2048
    $region41: #{tpu_custom_call.1} parent=1 // pred_fallthru
      _
    %1585 = vsyncpa [#allocation5], 1
    %1586 = vsyncpa [#allocation8], 1
    %1587 = vsyncpa [#allocation6], 1

</llo_original>
